<compile_context>
chip_gen: v5e
topology: v5e:2x2
jax: 0.10.0
libtpu: 0.0.40
codegen_flags: <defaults>
</compile_context>

<pallas_src>
import functools

import jax
import jax.numpy as jnp
from jax.experimental import pallas as pl
from jax.experimental.pallas import tpu as pltpu


# ---------------------------------------------------------------------------
# Kernel 1: fused sentence path + 2-layer word-LSTM recurrence.
#   Inputs are batched over M = B*S_max rows.  Outputs: stop/continue logits
#   (M, 2) and the layer-1 hidden states for every token (M, N_max, Hw).
# ---------------------------------------------------------------------------
def hier_kernel(feat_ref, swih_ref, sb_ref,
                fc1w_ref, fc1b_ref, fc2w_ref, fc2b_ref,
                binw_ref, binb_ref,
                emb_ref, l0wih_ref, l0b_ref, l0whh_ref,
                l1wih_ref, l1whh_ref, l1b_ref,
                bin_ref, hall_ref, *, n_max):
    f32 = jnp.float32
    hs = fc1w_ref.shape[0]          # sentence LSTM hidden dim
    hw = l0whh_ref.shape[0]         # word LSTM hidden dim
    m_rows = feat_ref.shape[0]      # M = B * S_max

    # ---- sentence path (1-step LSTM, zero init => forget gate dropped) ----
    x = feat_ref[...]                                                   # (M, P)
    gates = jnp.dot(x, swih_ref[...], preferred_element_type=f32) + sb_ref[...]
    i_g = jax.nn.sigmoid(gates[:, 0 * hs:1 * hs])
    g_g = jnp.tanh(gates[:, 1 * hs:2 * hs])
    o_g = jax.nn.sigmoid(gates[:, 2 * hs:3 * hs])
    c = i_g * g_g
    h = o_g * jnp.tanh(c)                                               # sent_output (M, Hs)

    hid1 = jnp.maximum(
        jnp.dot(h, fc1w_ref[...], preferred_element_type=f32) + fc1b_ref[...], 0.0)
    topic = jnp.maximum(
        jnp.dot(hid1, fc2w_ref[...], preferred_element_type=f32) + fc2b_ref[...], 0.0)
    bin_ref[...] = (jnp.dot(h, binw_ref[...], preferred_element_type=f32)
                    + binb_ref[...])                                    # (M, 2)

    # ---- word LSTM init: both layers get (topic[:, :Hw], topic[:, Hw:]) ----
    h0 = topic[:, :hw]
    c0 = topic[:, hw:]
    h1 = topic[:, :hw]
    c1 = topic[:, hw:]

    # Hoisted layer-0 input gates for ALL tokens in one big matmul.
    # emb_ref is token-major: rows [t*M : (t+1)*M] belong to token t.
    gx_all = (jnp.dot(emb_ref[...], l0wih_ref[...], preferred_element_type=f32)
              + l0b_ref[...])                                           # (N_max*M, 4Hw)

    # Hoist loop-invariant weight reads out of the token loop.
    l0whh = l0whh_ref[...]
    l1wih = l1wih_ref[...]
    l1whh = l1whh_ref[...]
    l1b = l1b_ref[...]

    def cell(g, c_prev):
        i_ = jax.nn.sigmoid(g[:, 0 * hw:1 * hw])
        f_ = jax.nn.sigmoid(g[:, 1 * hw:2 * hw])
        gg = jnp.tanh(g[:, 2 * hw:3 * hw])
        o_ = jax.nn.sigmoid(g[:, 3 * hw:4 * hw])
        c_new = f_ * c_prev + i_ * gg
        h_new = o_ * jnp.tanh(c_new)
        return h_new, c_new

    # Static unroll: N_max is small here.
    # TODO(synk): for large N_max (e.g. 50) switch to lax.fori_loop(unroll=k)
    #             to bound vreg live ranges.
    for t in range(n_max):
        gx = gx_all[t * m_rows:(t + 1) * m_rows, :]                     # (M, 4Hw)
        g0 = gx + jnp.dot(h0, l0whh, preferred_element_type=f32)
        h0, c0 = cell(g0, c0)
        g1 = (jnp.dot(h0, l1wih, preferred_element_type=f32)
              + jnp.dot(h1, l1whh, preferred_element_type=f32) + l1b)
        h1, c1 = cell(g1, c1)
        hall_ref[:, t, :] = h1                                          # (M, Hw)


# ---------------------------------------------------------------------------
# Kernel 2: word_FC as a single large matmul, tiled over the vocabulary.
# ---------------------------------------------------------------------------
def word_fc_kernel(h_ref, w_ref, b_ref, out_ref):
    out_ref[...] = (jnp.dot(h_ref[...], w_ref[...],
                            preferred_element_type=jnp.float32) + b_ref[...])


# ---------------------------------------------------------------------------
# Glue / wrapper
# ---------------------------------------------------------------------------
def _full_spec(shape):
    nd = len(shape)
    return pl.BlockSpec(shape, lambda *_: (0,) * nd)


def _vocab_tile(v, pref=2048):
    """Lane-dense vocab tile: multiple of 128 dividing V, else full V."""
    if v % 128 != 0:
        return v
    tv = min(v, pref)
    while v % tv != 0:
        tv -= 128
    return tv


def init_params(key, *, n_words, project_dim, sent_lstm, sent_fc, word_lstm,
                word_embed):
    """Deterministic synthetic parameters, PyTorch-shaped (out_dim, in_dim)."""
    def u(key, shape, scale=0.1):
        return jax.random.uniform(key, shape, jnp.float32, -scale, scale)

    ks = jax.random.split(key, 20)
    p = {
        # sentLSTM (1 layer, input project_dim -> sent_lstm)
        "sent_wih": u(ks[0], (4 * sent_lstm, project_dim)),
        "sent_whh": u(ks[1], (4 * sent_lstm, sent_lstm)),   # unused (h0 = 0), kept for shape parity
        "sent_bih": u(ks[2], (4 * sent_lstm,)),
        "sent_bhh": u(ks[3], (4 * sent_lstm,)),
        # sent_FC, sent_FC2, binarize
        "fc1_w": u(ks[4], (sent_fc, sent_lstm)),
        "fc1_b": u(ks[5], (sent_fc,)),
        "fc2_w": u(ks[6], (2 * word_lstm, sent_fc)),
        "fc2_b": u(ks[7], (2 * word_lstm,)),
        "bin_w": u(ks[8], (2, sent_lstm)),
        "bin_b": u(ks[9], (2,)),
        # word_LSTM (2 layers)
        "l0_wih": u(ks[10], (4 * word_lstm, word_embed)),
        "l0_whh": u(ks[11], (4 * word_lstm, word_lstm)),
        "l0_b":   u(ks[12], (4 * word_lstm,)),
        "l1_wih": u(ks[13], (4 * word_lstm, word_lstm)),
        "l1_whh": u(ks[14], (4 * word_lstm, word_lstm)),
        "l1_b":   u(ks[15], (4 * word_lstm,)),
        # word_FC, embedding table
        "fc_w": u(ks[16], (n_words, word_lstm)),
        "fc_b": u(ks[17], (n_words,)),
        "embed": u(ks[18], (n_words, word_embed), scale=1.0),
    }
    return p


def hier_rnn_forward(features, captions, params, *, s_max, n_max):
    B, P = features.shape
    hs = params["fc1_w"].shape[1]
    two_hw = params["fc2_w"].shape[0]
    hw = two_hw // 2
    e_dim = params["l0_wih"].shape[1]
    v = params["fc_w"].shape[0]
    M = B * s_max
    MN = M * n_max

    # --- sentence-path weights: pre-transpose; drop forget-gate columns
    #     (h0 = c0 = 0 so f*c0 == 0). Kept gate order: i, g, o.
    wih_t = params["sent_wih"].T                                   # (P, 4Hs)
    wih3_t = jnp.concatenate([wih_t[:, :hs], wih_t[:, 2 * hs:]], axis=1)
    b_all = params["sent_bih"] + params["sent_bhh"]
    sb3 = jnp.concatenate([b_all[:hs], b_all[2 * hs:]]).reshape(1, -1)
    fc1w_t = params["fc1_w"].T
    fc1b = params["fc1_b"].reshape(1, -1)
    fc2w_t = params["fc2_w"].T
    fc2b = params["fc2_b"].reshape(1, -1)
    binw_t = params["bin_w"].T
    binb = params["bin_b"].reshape(1, -1)

    # --- word-LSTM weights
    l0wih_t = params["l0_wih"].T
    l0whh_t = params["l0_whh"].T
    l0b = params["l0_b"].reshape(1, -1)
    l1wih_t = params["l1_wih"].T
    l1whh_t = params["l1_whh"].T
    l1b = params["l1_b"].reshape(1, -1)

    # Fold S_max into the batch (M = B*S_max rows, b-major ordering).
    feat_rep = jnp.repeat(features, s_max, axis=0)                 # (M, P)
    embeds = params["embed"][captions]                             # (B, S, N, E) gather (glue)
    # Token-major flatten: row t*M + (b*S_max + s)  -> contiguous slice per token.
    emb_tm = jnp.transpose(embeds, (2, 0, 1, 3)).reshape(n_max * M, e_dim)

    k1_inputs = (feat_rep, wih3_t, sb3, fc1w_t, fc1b, fc2w_t, fc2b, binw_t, binb,
                 emb_tm, l0wih_t, l0b, l0whh_t, l1wih_t, l1whh_t, l1b)

    binary, h_all = pl.pallas_call(
        functools.partial(hier_kernel, n_max=n_max),
        grid=(1,),
        in_specs=[_full_spec(a.shape) for a in k1_inputs],
        out_specs=[_full_spec((M, 2)), _full_spec((M, n_max, hw))],
        out_shape=(jax.ShapeDtypeStruct((M, 2), jnp.float32),
                   jax.ShapeDtypeStruct((M, n_max, hw), jnp.float32)),
        compiler_params=pltpu.CompilerParams(dimension_semantics=("arbitrary",)),
    )(*k1_inputs)

    # temp_distribution: identical binarize output per sentence (b-major rows).
    temp_distribution = binary.reshape(B, s_max, 2)

    # --- word_FC: one big lane-dense matmul tiled over the vocabulary. ---
    h_flat = h_all.reshape(MN, hw)                                 # free reshape (leading dims)
    fcw_t = params["fc_w"].T                                       # (Hw, V)
    fcb = params["fc_b"].reshape(1, -1)
    tv = _vocab_tile(v)

    logits = pl.pallas_call(
        word_fc_kernel,
        grid=(v // tv,),
        in_specs=[pl.BlockSpec((MN, hw), lambda j: (0, 0)),
                  pl.BlockSpec((hw, tv), lambda j: (0, j)),
                  pl.BlockSpec((1, tv), lambda j: (0, j))],
        out_specs=pl.BlockSpec((MN, tv), lambda j: (0, j)),
        out_shape=jax.ShapeDtypeStruct((MN, v), jnp.float32),
        compiler_params=pltpu.CompilerParams(dimension_semantics=("parallel",)),
    )(h_flat, fcw_t, fcb)

    final_output = logits.reshape(B, s_max, n_max, v)              # free reshape
    return temp_distribution, final_output


# TODO(synk): HierRNN.sample() is not translated (it references an undefined
#             `outputs` variable and is unreachable from forward()).

if __name__ == "__main__":
    # Small shapes consistent with the module (scaled-down 512/1024 dims).
    B = 2            # batch_size
    P = 32           # project_dim (sentLSTM input; features.view(B, 1, -1))
    HS = 32          # sentRNN_lstm_dim
    FC = 64          # sentRNN_FC_dim
    HW = 32          # wordRNN_lstm_dim (sent_FC2 outputs 2*HW, split into h/c)
    E = 32           # word_embed_dim
    V = 64           # n_words
    S_MAX = 3
    N_MAX = 4

    key = jax.random.PRNGKey(0)
    k_par, k_feat, k_cap = jax.random.split(key, 3)

    params = init_params(k_par, n_words=V, project_dim=P, sent_lstm=HS,
                         sent_fc=FC, word_lstm=HW, word_embed=E)

    features = jax.random.normal(k_feat, (B, P), jnp.float32)
    captions = jax.random.randint(k_cap, (B, S_MAX, N_MAX), 0, V, jnp.int32)

    temp_distribution, final_output = hier_rnn_forward(
        features, captions, params, s_max=S_MAX, n_max=N_MAX)

    jax.block_until_ready((temp_distribution, final_output))
    assert temp_distribution.shape == (B, S_MAX, 2)
    assert final_output.shape == (B, S_MAX, N_MAX, V)
    print("KERNEL_OK")
</pallas_src>

<mosaic_0001>
module attributes {stable_mosaic.version = 11 : i64} {
  func.func @hier_kernel(%arg0: i32, %arg1: memref<6x32xf32, #tpu.memory_space<vmem>>, %arg2: memref<32x96xf32, #tpu.memory_space<vmem>>, %arg3: memref<1x96xf32, #tpu.memory_space<vmem>>, %arg4: memref<32x64xf32, #tpu.memory_space<vmem>>, %arg5: memref<1x64xf32, #tpu.memory_space<vmem>>, %arg6: memref<64x64xf32, #tpu.memory_space<vmem>>, %arg7: memref<1x64xf32, #tpu.memory_space<vmem>>, %arg8: memref<32x2xf32, #tpu.memory_space<vmem>>, %arg9: memref<1x2xf32, #tpu.memory_space<vmem>>, %arg10: memref<24x32xf32, #tpu.memory_space<vmem>>, %arg11: memref<32x128xf32, #tpu.memory_space<vmem>>, %arg12: memref<1x128xf32, #tpu.memory_space<vmem>>, %arg13: memref<32x128xf32, #tpu.memory_space<vmem>>, %arg14: memref<32x128xf32, #tpu.memory_space<vmem>>, %arg15: memref<32x128xf32, #tpu.memory_space<vmem>>, %arg16: memref<1x128xf32, #tpu.memory_space<vmem>>, %arg17: memref<6x2xf32, #tpu.memory_space<vmem>>, %arg18: memref<6x4x32xf32, #tpu.memory_space<vmem>>) attributes {dimension_semantics = [#tpu.dimension_semantics<arbitrary>], iteration_bounds = array<i64: 1>, scalar_prefetch = 0 : i64, scratch_operands = 0 : i64, tpu.core_type = #tpu.core_type<tc>, window_params = [{pipeline_mode = #tpu.pipeline_mode<synchronous>, transform_indices = @transform_0, window_bounds = array<i64: 6, 32>}, {pipeline_mode = #tpu.pipeline_mode<synchronous>, transform_indices = @transform_1, window_bounds = array<i64: 32, 96>}, {pipeline_mode = #tpu.pipeline_mode<synchronous>, transform_indices = @transform_2, window_bounds = array<i64: 1, 96>}, {pipeline_mode = #tpu.pipeline_mode<synchronous>, transform_indices = @transform_3, window_bounds = array<i64: 32, 64>}, {pipeline_mode = #tpu.pipeline_mode<synchronous>, transform_indices = @transform_4, window_bounds = array<i64: 1, 64>}, {pipeline_mode = #tpu.pipeline_mode<synchronous>, transform_indices = @transform_5, window_bounds = array<i64: 64, 64>}, {pipeline_mode = #tpu.pipeline_mode<synchronous>, transform_indices = @transform_6, window_bounds = array<i64: 1, 64>}, {pipeline_mode = #tpu.pipeline_mode<synchronous>, transform_indices = @transform_7, window_bounds = array<i64: 32, 2>}, {pipeline_mode = #tpu.pipeline_mode<synchronous>, transform_indices = @transform_8, window_bounds = array<i64: 1, 2>}, {pipeline_mode = #tpu.pipeline_mode<synchronous>, transform_indices = @transform_9, window_bounds = array<i64: 24, 32>}, {pipeline_mode = #tpu.pipeline_mode<synchronous>, transform_indices = @transform_10, window_bounds = array<i64: 32, 128>}, {pipeline_mode = #tpu.pipeline_mode<synchronous>, transform_indices = @transform_11, window_bounds = array<i64: 1, 128>}, {pipeline_mode = #tpu.pipeline_mode<synchronous>, transform_indices = @transform_12, window_bounds = array<i64: 32, 128>}, {pipeline_mode = #tpu.pipeline_mode<synchronous>, transform_indices = @transform_13, window_bounds = array<i64: 32, 128>}, {pipeline_mode = #tpu.pipeline_mode<synchronous>, transform_indices = @transform_14, window_bounds = array<i64: 32, 128>}, {pipeline_mode = #tpu.pipeline_mode<synchronous>, transform_indices = @transform_15, window_bounds = array<i64: 1, 128>}, {pipeline_mode = #tpu.pipeline_mode<synchronous>, transform_indices = @transform_16, window_bounds = array<i64: 6, 2>}, {pipeline_mode = #tpu.pipeline_mode<synchronous>, transform_indices = @transform_17, window_bounds = array<i64: 6, 4, 32>}]} {
    %c0 = arith.constant 0 : index
    %c0_0 = arith.constant 0 : index
    %0 = vector.load %arg1[%c0, %c0_0] : memref<6x32xf32, #tpu.memory_space<vmem>>, vector<6x32xf32>
    %c0_1 = arith.constant 0 : index
    %c0_2 = arith.constant 0 : index
    %1 = vector.load %arg2[%c0_1, %c0_2] : memref<32x96xf32, #tpu.memory_space<vmem>>, vector<32x96xf32>
    %cst = arith.constant dense<0.000000e+00> : vector<6x96xf32>
    %2 = tpu.matmul %0, %1, %cst {dimension_numbers = #tpu.dot_dimension_numbers<[1], [0], [0], [1], [0, 0, 1, 1], [], []>} : vector<6x32xf32>, vector<32x96xf32>, vector<6x96xf32> -> vector<6x96xf32>
    %c0_3 = arith.constant 0 : index
    %c0_4 = arith.constant 0 : index
    %3 = vector.load %arg3[%c0_3, %c0_4] : memref<1x96xf32, #tpu.memory_space<vmem>>, vector<1x96xf32>
    %4 = vector.broadcast %3 : vector<1x96xf32> to vector<6x96xf32>
    %5 = arith.addf %2, %4 : vector<6x96xf32>
    %6 = vector.extract_strided_slice %5 {offsets = [0, 0], sizes = [6, 32], strides = [1, 1]} : vector<6x96xf32> to vector<6x32xf32>
    %7 = arith.negf %6 : vector<6x32xf32>
    %8 = math.exp %7 : vector<6x32xf32>
    %cst_5 = arith.constant 1.000000e+00 : f32
    %9 = vector.broadcast %cst_5 : f32 to vector<6x32xf32>
    %10 = arith.addf %9, %8 : vector<6x32xf32>
    %11 = arith.divf %9, %10 : vector<6x32xf32>
    %12 = vector.extract_strided_slice %5 {offsets = [0, 32], sizes = [6, 32], strides = [1, 1]} : vector<6x96xf32> to vector<6x32xf32>
    %13 = math.tanh %12 : vector<6x32xf32>
    %14 = vector.extract_strided_slice %5 {offsets = [0, 64], sizes = [6, 32], strides = [1, 1]} : vector<6x96xf32> to vector<6x32xf32>
    %15 = arith.negf %14 : vector<6x32xf32>
    %16 = math.exp %15 : vector<6x32xf32>
    %cst_6 = arith.constant 1.000000e+00 : f32
    %17 = vector.broadcast %cst_6 : f32 to vector<6x32xf32>
    %18 = arith.addf %17, %16 : vector<6x32xf32>
    %19 = arith.divf %17, %18 : vector<6x32xf32>
    %20 = arith.mulf %11, %13 : vector<6x32xf32>
    %21 = math.tanh %20 : vector<6x32xf32>
    %22 = arith.mulf %19, %21 : vector<6x32xf32>
    %c0_7 = arith.constant 0 : index
    %c0_8 = arith.constant 0 : index
    %23 = vector.load %arg4[%c0_7, %c0_8] : memref<32x64xf32, #tpu.memory_space<vmem>>, vector<32x64xf32>
    %cst_9 = arith.constant dense<0.000000e+00> : vector<6x64xf32>
    %24 = tpu.matmul %22, %23, %cst_9 {dimension_numbers = #tpu.dot_dimension_numbers<[1], [0], [0], [1], [0, 0, 1, 1], [], []>} : vector<6x32xf32>, vector<32x64xf32>, vector<6x64xf32> -> vector<6x64xf32>
    %c0_10 = arith.constant 0 : index
    %c0_11 = arith.constant 0 : index
    %25 = vector.load %arg5[%c0_10, %c0_11] : memref<1x64xf32, #tpu.memory_space<vmem>>, vector<1x64xf32>
    %26 = vector.broadcast %25 : vector<1x64xf32> to vector<6x64xf32>
    %27 = arith.addf %24, %26 : vector<6x64xf32>
    %cst_12 = arith.constant 0.000000e+00 : f32
    %28 = vector.broadcast %cst_12 : f32 to vector<6x64xf32>
    %29 = arith.maximumf %27, %28 : vector<6x64xf32>
    %c0_13 = arith.constant 0 : index
    %c0_14 = arith.constant 0 : index
    %30 = vector.load %arg6[%c0_13, %c0_14] : memref<64x64xf32, #tpu.memory_space<vmem>>, vector<64x64xf32>
    %cst_15 = arith.constant dense<0.000000e+00> : vector<6x64xf32>
    %31 = tpu.matmul %29, %30, %cst_15 {dimension_numbers = #tpu.dot_dimension_numbers<[1], [0], [0], [1], [0, 0, 1, 1], [], []>} : vector<6x64xf32>, vector<64x64xf32>, vector<6x64xf32> -> vector<6x64xf32>
    %c0_16 = arith.constant 0 : index
    %c0_17 = arith.constant 0 : index
    %32 = vector.load %arg7[%c0_16, %c0_17] : memref<1x64xf32, #tpu.memory_space<vmem>>, vector<1x64xf32>
    %33 = vector.broadcast %32 : vector<1x64xf32> to vector<6x64xf32>
    %34 = arith.addf %31, %33 : vector<6x64xf32>
    %cst_18 = arith.constant 0.000000e+00 : f32
    %35 = vector.broadcast %cst_18 : f32 to vector<6x64xf32>
    %36 = arith.maximumf %34, %35 : vector<6x64xf32>
    %c0_19 = arith.constant 0 : index
    %c0_20 = arith.constant 0 : index
    %37 = vector.load %arg8[%c0_19, %c0_20] : memref<32x2xf32, #tpu.memory_space<vmem>>, vector<32x2xf32>
    %cst_21 = arith.constant dense<0.000000e+00> : vector<6x2xf32>
    %38 = tpu.matmul %22, %37, %cst_21 {dimension_numbers = #tpu.dot_dimension_numbers<[1], [0], [0], [1], [0, 0, 1, 1], [], []>} : vector<6x32xf32>, vector<32x2xf32>, vector<6x2xf32> -> vector<6x2xf32>
    %c0_22 = arith.constant 0 : index
    %c0_23 = arith.constant 0 : index
    %39 = vector.load %arg9[%c0_22, %c0_23] : memref<1x2xf32, #tpu.memory_space<vmem>>, vector<1x2xf32>
    %40 = vector.broadcast %39 : vector<1x2xf32> to vector<6x2xf32>
    %41 = arith.addf %38, %40 : vector<6x2xf32>
    %c0_24 = arith.constant 0 : index
    %c0_25 = arith.constant 0 : index
    %42 = vector.load %arg17[%c0_24, %c0_25] : memref<6x2xf32, #tpu.memory_space<vmem>>, vector<6x2xf32>
    tpu.vector_store %arg17[%c0_24, %c0_25], %41 {strides = array<i32>} : memref<6x2xf32, #tpu.memory_space<vmem>>, vector<6x2xf32>,
    %43 = vector.extract_strided_slice %36 {offsets = [0, 0], sizes = [6, 32], strides = [1, 1]} : vector<6x64xf32> to vector<6x32xf32>
    %44 = vector.extract_strided_slice %36 {offsets = [0, 32], sizes = [6, 32], strides = [1, 1]} : vector<6x64xf32> to vector<6x32xf32>
    %45 = vector.extract_strided_slice %36 {offsets = [0, 0], sizes = [6, 32], strides = [1, 1]} : vector<6x64xf32> to vector<6x32xf32>
    %46 = vector.extract_strided_slice %36 {offsets = [0, 32], sizes = [6, 32], strides = [1, 1]} : vector<6x64xf32> to vector<6x32xf32>
    %c0_26 = arith.constant 0 : index
    %c0_27 = arith.constant 0 : index
    %47 = vector.load %arg10[%c0_26, %c0_27] : memref<24x32xf32, #tpu.memory_space<vmem>>, vector<24x32xf32>
    %c0_28 = arith.constant 0 : index
    %c0_29 = arith.constant 0 : index
    %48 = vector.load %arg11[%c0_28, %c0_29] : memref<32x128xf32, #tpu.memory_space<vmem>>, vector<32x128xf32>
    %cst_30 = arith.constant dense<0.000000e+00> : vector<24x128xf32>
    %49 = tpu.matmul %47, %48, %cst_30 {dimension_numbers = #tpu.dot_dimension_numbers<[1], [0], [0], [1], [0, 0, 1, 1], [], []>} : vector<24x32xf32>, vector<32x128xf32>, vector<24x128xf32> -> vector<24x128xf32>
    %c0_31 = arith.constant 0 : index
    %c0_32 = arith.constant 0 : index
    %50 = vector.load %arg12[%c0_31, %c0_32] : memref<1x128xf32, #tpu.memory_space<vmem>>, vector<1x128xf32>
    %51 = vector.broadcast %50 : vector<1x128xf32> to vector<24x128xf32>
    %52 = arith.addf %49, %51 : vector<24x128xf32>
    %c0_33 = arith.constant 0 : index
    %c0_34 = arith.constant 0 : index
    %53 = vector.load %arg13[%c0_33, %c0_34] : memref<32x128xf32, #tpu.memory_space<vmem>>, vector<32x128xf32>
    %c0_35 = arith.constant 0 : index
    %c0_36 = arith.constant 0 : index
    %54 = vector.load %arg14[%c0_35, %c0_36] : memref<32x128xf32, #tpu.memory_space<vmem>>, vector<32x128xf32>
    %c0_37 = arith.constant 0 : index
    %c0_38 = arith.constant 0 : index
    %55 = vector.load %arg15[%c0_37, %c0_38] : memref<32x128xf32, #tpu.memory_space<vmem>>, vector<32x128xf32>
    %c0_39 = arith.constant 0 : index
    %c0_40 = arith.constant 0 : index
    %56 = vector.load %arg16[%c0_39, %c0_40] : memref<1x128xf32, #tpu.memory_space<vmem>>, vector<1x128xf32>
    %57 = vector.extract_strided_slice %52 {offsets = [0, 0], sizes = [6, 128], strides = [1, 1]} : vector<24x128xf32> to vector<6x128xf32>
    %cst_41 = arith.constant dense<0.000000e+00> : vector<6x128xf32>
    %58 = tpu.matmul %43, %53, %cst_41 {dimension_numbers = #tpu.dot_dimension_numbers<[1], [0], [0], [1], [0, 0, 1, 1], [], []>} : vector<6x32xf32>, vector<32x128xf32>, vector<6x128xf32> -> vector<6x128xf32>
    %59 = arith.addf %57, %58 : vector<6x128xf32>
    %60 = vector.extract_strided_slice %59 {offsets = [0, 0], sizes = [6, 32], strides = [1, 1]} : vector<6x128xf32> to vector<6x32xf32>
    %61 = arith.negf %60 : vector<6x32xf32>
    %62 = math.exp %61 : vector<6x32xf32>
    %cst_42 = arith.constant 1.000000e+00 : f32
    %63 = vector.broadcast %cst_42 : f32 to vector<6x32xf32>
    %64 = arith.addf %63, %62 : vector<6x32xf32>
    %65 = arith.divf %63, %64 : vector<6x32xf32>
    %66 = vector.extract_strided_slice %59 {offsets = [0, 32], sizes = [6, 32], strides = [1, 1]} : vector<6x128xf32> to vector<6x32xf32>
    %67 = arith.negf %66 : vector<6x32xf32>
    %68 = math.exp %67 : vector<6x32xf32>
    %cst_43 = arith.constant 1.000000e+00 : f32
    %69 = vector.broadcast %cst_43 : f32 to vector<6x32xf32>
    %70 = arith.addf %69, %68 : vector<6x32xf32>
    %71 = arith.divf %69, %70 : vector<6x32xf32>
    %72 = vector.extract_strided_slice %59 {offsets = [0, 64], sizes = [6, 32], strides = [1, 1]} : vector<6x128xf32> to vector<6x32xf32>
    %73 = math.tanh %72 : vector<6x32xf32>
    %74 = vector.extract_strided_slice %59 {offsets = [0, 96], sizes = [6, 32], strides = [1, 1]} : vector<6x128xf32> to vector<6x32xf32>
    %75 = arith.negf %74 : vector<6x32xf32>
    %76 = math.exp %75 : vector<6x32xf32>
    %cst_44 = arith.constant 1.000000e+00 : f32
    %77 = vector.broadcast %cst_44 : f32 to vector<6x32xf32>
    %78 = arith.addf %77, %76 : vector<6x32xf32>
    %79 = arith.divf %77, %78 : vector<6x32xf32>
    %80 = arith.mulf %71, %44 : vector<6x32xf32>
    %81 = arith.mulf %65, %73 : vector<6x32xf32>
    %82 = arith.addf %80, %81 : vector<6x32xf32>
    %83 = math.tanh %82 : vector<6x32xf32>
    %84 = arith.mulf %79, %83 : vector<6x32xf32>
    %cst_45 = arith.constant dense<0.000000e+00> : vector<6x128xf32>
    %85 = tpu.matmul %84, %54, %cst_45 {dimension_numbers = #tpu.dot_dimension_numbers<[1], [0], [0], [1], [0, 0, 1, 1], [], []>} : vector<6x32xf32>, vector<32x128xf32>, vector<6x128xf32> -> vector<6x128xf32>
    %cst_46 = arith.constant dense<0.000000e+00> : vector<6x128xf32>
    %86 = tpu.matmul %45, %55, %cst_46 {dimension_numbers = #tpu.dot_dimension_numbers<[1], [0], [0], [1], [0, 0, 1, 1], [], []>} : vector<6x32xf32>, vector<32x128xf32>, vector<6x128xf32> -> vector<6x128xf32>
    %87 = arith.addf %85, %86 : vector<6x128xf32>
    %88 = vector.broadcast %56 : vector<1x128xf32> to vector<6x128xf32>
    %89 = arith.addf %87, %88 : vector<6x128xf32>
    %90 = vector.extract_strided_slice %89 {offsets = [0, 0], sizes = [6, 32], strides = [1, 1]} : vector<6x128xf32> to vector<6x32xf32>
    %91 = arith.negf %90 : vector<6x32xf32>
    %92 = math.exp %91 : vector<6x32xf32>
    %cst_47 = arith.constant 1.000000e+00 : f32
    %93 = vector.broadcast %cst_47 : f32 to vector<6x32xf32>
    %94 = arith.addf %93, %92 : vector<6x32xf32>
    %95 = arith.divf %93, %94 : vector<6x32xf32>
    %96 = vector.extract_strided_slice %89 {offsets = [0, 32], sizes = [6, 32], strides = [1, 1]} : vector<6x128xf32> to vector<6x32xf32>
    %97 = arith.negf %96 : vector<6x32xf32>
    %98 = math.exp %97 : vector<6x32xf32>
    %cst_48 = arith.constant 1.000000e+00 : f32
    %99 = vector.broadcast %cst_48 : f32 to vector<6x32xf32>
    %100 = arith.addf %99, %98 : vector<6x32xf32>
    %101 = arith.divf %99, %100 : vector<6x32xf32>
    %102 = vector.extract_strided_slice %89 {offsets = [0, 64], sizes = [6, 32], strides = [1, 1]} : vector<6x128xf32> to vector<6x32xf32>
    %103 = math.tanh %102 : vector<6x32xf32>
    %104 = vector.extract_strided_slice %89 {offsets = [0, 96], sizes = [6, 32], strides = [1, 1]} : vector<6x128xf32> to vector<6x32xf32>
    %105 = arith.negf %104 : vector<6x32xf32>
    %106 = math.exp %105 : vector<6x32xf32>
    %cst_49 = arith.constant 1.000000e+00 : f32
    %107 = vector.broadcast %cst_49 : f32 to vector<6x32xf32>
    %108 = arith.addf %107, %106 : vector<6x32xf32>
    %109 = arith.divf %107, %108 : vector<6x32xf32>
    %110 = arith.mulf %101, %46 : vector<6x32xf32>
    %111 = arith.mulf %95, %103 : vector<6x32xf32>
    %112 = arith.addf %110, %111 : vector<6x32xf32>
    %113 = math.tanh %112 : vector<6x32xf32>
    %114 = arith.mulf %109, %113 : vector<6x32xf32>
    %c0_50 = arith.constant 0 : index
    %c0_51 = arith.constant 0 : index
    %c0_52 = arith.constant 0 : index
    %115 = vector.load %arg18[%c0_50, %c0_51, %c0_52] : memref<6x4x32xf32, #tpu.memory_space<vmem>>, vector<6x1x32xf32>
    %116 = vector.shape_cast %115 : vector<6x1x32xf32> to vector<6x32xf32>
    %117 = vector.shape_cast %114 : vector<6x32xf32> to vector<6x1x32xf32>
    tpu.vector_store %arg18[%c0_50, %c0_51, %c0_52], %117 {strides = array<i32>} : memref<6x4x32xf32, #tpu.memory_space<vmem>>, vector<6x1x32xf32>,
    %118 = vector.extract_strided_slice %52 {offsets = [6, 0], sizes = [6, 128], strides = [1, 1]} : vector<24x128xf32> to vector<6x128xf32>
    %cst_53 = arith.constant dense<0.000000e+00> : vector<6x128xf32>
    %119 = tpu.matmul %84, %53, %cst_53 {dimension_numbers = #tpu.dot_dimension_numbers<[1], [0], [0], [1], [0, 0, 1, 1], [], []>} : vector<6x32xf32>, vector<32x128xf32>, vector<6x128xf32> -> vector<6x128xf32>
    %120 = arith.addf %118, %119 : vector<6x128xf32>
    %121 = vector.extract_strided_slice %120 {offsets = [0, 0], sizes = [6, 32], strides = [1, 1]} : vector<6x128xf32> to vector<6x32xf32>
    %122 = arith.negf %121 : vector<6x32xf32>
    %123 = math.exp %122 : vector<6x32xf32>
    %cst_54 = arith.constant 1.000000e+00 : f32
    %124 = vector.broadcast %cst_54 : f32 to vector<6x32xf32>
    %125 = arith.addf %124, %123 : vector<6x32xf32>
    %126 = arith.divf %124, %125 : vector<6x32xf32>
    %127 = vector.extract_strided_slice %120 {offsets = [0, 32], sizes = [6, 32], strides = [1, 1]} : vector<6x128xf32> to vector<6x32xf32>
    %128 = arith.negf %127 : vector<6x32xf32>
    %129 = math.exp %128 : vector<6x32xf32>
    %cst_55 = arith.constant 1.000000e+00 : f32
    %130 = vector.broadcast %cst_55 : f32 to vector<6x32xf32>
    %131 = arith.addf %130, %129 : vector<6x32xf32>
    %132 = arith.divf %130, %131 : vector<6x32xf32>
    %133 = vector.extract_strided_slice %120 {offsets = [0, 64], sizes = [6, 32], strides = [1, 1]} : vector<6x128xf32> to vector<6x32xf32>
    %134 = math.tanh %133 : vector<6x32xf32>
    %135 = vector.extract_strided_slice %120 {offsets = [0, 96], sizes = [6, 32], strides = [1, 1]} : vector<6x128xf32> to vector<6x32xf32>
    %136 = arith.negf %135 : vector<6x32xf32>
    %137 = math.exp %136 : vector<6x32xf32>
    %cst_56 = arith.constant 1.000000e+00 : f32
    %138 = vector.broadcast %cst_56 : f32 to vector<6x32xf32>
    %139 = arith.addf %138, %137 : vector<6x32xf32>
    %140 = arith.divf %138, %139 : vector<6x32xf32>
    %141 = arith.mulf %132, %82 : vector<6x32xf32>
    %142 = arith.mulf %126, %134 : vector<6x32xf32>
    %143 = arith.addf %141, %142 : vector<6x32xf32>
    %144 = math.tanh %143 : vector<6x32xf32>
    %145 = arith.mulf %140, %144 : vector<6x32xf32>
    %cst_57 = arith.constant dense<0.000000e+00> : vector<6x128xf32>
    %146 = tpu.matmul %145, %54, %cst_57 {dimension_numbers = #tpu.dot_dimension_numbers<[1], [0], [0], [1], [0, 0, 1, 1], [], []>} : vector<6x32xf32>, vector<32x128xf32>, vector<6x128xf32> -> vector<6x128xf32>
    %cst_58 = arith.constant dense<0.000000e+00> : vector<6x128xf32>
    %147 = tpu.matmul %114, %55, %cst_58 {dimension_numbers = #tpu.dot_dimension_numbers<[1], [0], [0], [1], [0, 0, 1, 1], [], []>} : vector<6x32xf32>, vector<32x128xf32>, vector<6x128xf32> -> vector<6x128xf32>
    %148 = arith.addf %146, %147 : vector<6x128xf32>
    %149 = vector.broadcast %56 : vector<1x128xf32> to vector<6x128xf32>
    %150 = arith.addf %148, %149 : vector<6x128xf32>
    %151 = vector.extract_strided_slice %150 {offsets = [0, 0], sizes = [6, 32], strides = [1, 1]} : vector<6x128xf32> to vector<6x32xf32>
    %152 = arith.negf %151 : vector<6x32xf32>
    %153 = math.exp %152 : vector<6x32xf32>
    %cst_59 = arith.constant 1.000000e+00 : f32
    %154 = vector.broadcast %cst_59 : f32 to vector<6x32xf32>
    %155 = arith.addf %154, %153 : vector<6x32xf32>
    %156 = arith.divf %154, %155 : vector<6x32xf32>
    %157 = vector.extract_strided_slice %150 {offsets = [0, 32], sizes = [6, 32], strides = [1, 1]} : vector<6x128xf32> to vector<6x32xf32>
    %158 = arith.negf %157 : vector<6x32xf32>
    %159 = math.exp %158 : vector<6x32xf32>
    %cst_60 = arith.constant 1.000000e+00 : f32
    %160 = vector.broadcast %cst_60 : f32 to vector<6x32xf32>
    %161 = arith.addf %160, %159 : vector<6x32xf32>
    %162 = arith.divf %160, %161 : vector<6x32xf32>
    %163 = vector.extract_strided_slice %150 {offsets = [0, 64], sizes = [6, 32], strides = [1, 1]} : vector<6x128xf32> to vector<6x32xf32>
    %164 = math.tanh %163 : vector<6x32xf32>
    %165 = vector.extract_strided_slice %150 {offsets = [0, 96], sizes = [6, 32], strides = [1, 1]} : vector<6x128xf32> to vector<6x32xf32>
    %166 = arith.negf %165 : vector<6x32xf32>
    %167 = math.exp %166 : vector<6x32xf32>
    %cst_61 = arith.constant 1.000000e+00 : f32
    %168 = vector.broadcast %cst_61 : f32 to vector<6x32xf32>
    %169 = arith.addf %168, %167 : vector<6x32xf32>
    %170 = arith.divf %168, %169 : vector<6x32xf32>
    %171 = arith.mulf %162, %112 : vector<6x32xf32>
    %172 = arith.mulf %156, %164 : vector<6x32xf32>
    %173 = arith.addf %171, %172 : vector<6x32xf32>
    %174 = math.tanh %173 : vector<6x32xf32>
    %175 = arith.mulf %170, %174 : vector<6x32xf32>
    %c0_62 = arith.constant 0 : index
    %c1 = arith.constant 1 : index
    %c0_63 = arith.constant 0 : index
    %176 = vector.load %arg18[%c0_62, %c1, %c0_63] : memref<6x4x32xf32, #tpu.memory_space<vmem>>, vector<6x1x32xf32>
    %177 = vector.shape_cast %176 : vector<6x1x32xf32> to vector<6x32xf32>
    %178 = vector.shape_cast %175 : vector<6x32xf32> to vector<6x1x32xf32>
    tpu.vector_store %arg18[%c0_62, %c1, %c0_63], %178 {strides = array<i32>} : memref<6x4x32xf32, #tpu.memory_space<vmem>>, vector<6x1x32xf32>,
    %179 = vector.extract_strided_slice %52 {offsets = [12, 0], sizes = [6, 128], strides = [1, 1]} : vector<24x128xf32> to vector<6x128xf32>
    %cst_64 = arith.constant dense<0.000000e+00> : vector<6x128xf32>
    %180 = tpu.matmul %145, %53, %cst_64 {dimension_numbers = #tpu.dot_dimension_numbers<[1], [0], [0], [1], [0, 0, 1, 1], [], []>} : vector<6x32xf32>, vector<32x128xf32>, vector<6x128xf32> -> vector<6x128xf32>
    %181 = arith.addf %179, %180 : vector<6x128xf32>
    %182 = vector.extract_strided_slice %181 {offsets = [0, 0], sizes = [6, 32], strides = [1, 1]} : vector<6x128xf32> to vector<6x32xf32>
    %183 = arith.negf %182 : vector<6x32xf32>
    %184 = math.exp %183 : vector<6x32xf32>
    %cst_65 = arith.constant 1.000000e+00 : f32
    %185 = vector.broadcast %cst_65 : f32 to vector<6x32xf32>
    %186 = arith.addf %185, %184 : vector<6x32xf32>
    %187 = arith.divf %185, %186 : vector<6x32xf32>
    %188 = vector.extract_strided_slice %181 {offsets = [0, 32], sizes = [6, 32], strides = [1, 1]} : vector<6x128xf32> to vector<6x32xf32>
    %189 = arith.negf %188 : vector<6x32xf32>
    %190 = math.exp %189 : vector<6x32xf32>
    %cst_66 = arith.constant 1.000000e+00 : f32
    %191 = vector.broadcast %cst_66 : f32 to vector<6x32xf32>
    %192 = arith.addf %191, %190 : vector<6x32xf32>
    %193 = arith.divf %191, %192 : vector<6x32xf32>
    %194 = vector.extract_strided_slice %181 {offsets = [0, 64], sizes = [6, 32], strides = [1, 1]} : vector<6x128xf32> to vector<6x32xf32>
    %195 = math.tanh %194 : vector<6x32xf32>
    %196 = vector.extract_strided_slice %181 {offsets = [0, 96], sizes = [6, 32], strides = [1, 1]} : vector<6x128xf32> to vector<6x32xf32>
    %197 = arith.negf %196 : vector<6x32xf32>
    %198 = math.exp %197 : vector<6x32xf32>
    %cst_67 = arith.constant 1.000000e+00 : f32
    %199 = vector.broadcast %cst_67 : f32 to vector<6x32xf32>
    %200 = arith.addf %199, %198 : vector<6x32xf32>
    %201 = arith.divf %199, %200 : vector<6x32xf32>
    %202 = arith.mulf %193, %143 : vector<6x32xf32>
    %203 = arith.mulf %187, %195 : vector<6x32xf32>
    %204 = arith.addf %202, %203 : vector<6x32xf32>
    %205 = math.tanh %204 : vector<6x32xf32>
    %206 = arith.mulf %201, %205 : vector<6x32xf32>
    %cst_68 = arith.constant dense<0.000000e+00> : vector<6x128xf32>
    %207 = tpu.matmul %206, %54, %cst_68 {dimension_numbers = #tpu.dot_dimension_numbers<[1], [0], [0], [1], [0, 0, 1, 1], [], []>} : vector<6x32xf32>, vector<32x128xf32>, vector<6x128xf32> -> vector<6x128xf32>
    %cst_69 = arith.constant dense<0.000000e+00> : vector<6x128xf32>
    %208 = tpu.matmul %175, %55, %cst_69 {dimension_numbers = #tpu.dot_dimension_numbers<[1], [0], [0], [1], [0, 0, 1, 1], [], []>} : vector<6x32xf32>, vector<32x128xf32>, vector<6x128xf32> -> vector<6x128xf32>
    %209 = arith.addf %207, %208 : vector<6x128xf32>
    %210 = vector.broadcast %56 : vector<1x128xf32> to vector<6x128xf32>
    %211 = arith.addf %209, %210 : vector<6x128xf32>
    %212 = vector.extract_strided_slice %211 {offsets = [0, 0], sizes = [6, 32], strides = [1, 1]} : vector<6x128xf32> to vector<6x32xf32>
    %213 = arith.negf %212 : vector<6x32xf32>
    %214 = math.exp %213 : vector<6x32xf32>
    %cst_70 = arith.constant 1.000000e+00 : f32
    %215 = vector.broadcast %cst_70 : f32 to vector<6x32xf32>
    %216 = arith.addf %215, %214 : vector<6x32xf32>
    %217 = arith.divf %215, %216 : vector<6x32xf32>
    %218 = vector.extract_strided_slice %211 {offsets = [0, 32], sizes = [6, 32], strides = [1, 1]} : vector<6x128xf32> to vector<6x32xf32>
    %219 = arith.negf %218 : vector<6x32xf32>
    %220 = math.exp %219 : vector<6x32xf32>
    %cst_71 = arith.constant 1.000000e+00 : f32
    %221 = vector.broadcast %cst_71 : f32 to vector<6x32xf32>
    %222 = arith.addf %221, %220 : vector<6x32xf32>
    %223 = arith.divf %221, %222 : vector<6x32xf32>
    %224 = vector.extract_strided_slice %211 {offsets = [0, 64], sizes = [6, 32], strides = [1, 1]} : vector<6x128xf32> to vector<6x32xf32>
    %225 = math.tanh %224 : vector<6x32xf32>
    %226 = vector.extract_strided_slice %211 {offsets = [0, 96], sizes = [6, 32], strides = [1, 1]} : vector<6x128xf32> to vector<6x32xf32>
    %227 = arith.negf %226 : vector<6x32xf32>
    %228 = math.exp %227 : vector<6x32xf32>
    %cst_72 = arith.constant 1.000000e+00 : f32
    %229 = vector.broadcast %cst_72 : f32 to vector<6x32xf32>
    %230 = arith.addf %229, %228 : vector<6x32xf32>
    %231 = arith.divf %229, %230 : vector<6x32xf32>
    %232 = arith.mulf %223, %173 : vector<6x32xf32>
    %233 = arith.mulf %217, %225 : vector<6x32xf32>
    %234 = arith.addf %232, %233 : vector<6x32xf32>
    %235 = math.tanh %234 : vector<6x32xf32>
    %236 = arith.mulf %231, %235 : vector<6x32xf32>
    %c0_73 = arith.constant 0 : index
    %c2 = arith.constant 2 : index
    %c0_74 = arith.constant 0 : index
    %237 = vector.load %arg18[%c0_73, %c2, %c0_74] : memref<6x4x32xf32, #tpu.memory_space<vmem>>, vector<6x1x32xf32>
    %238 = vector.shape_cast %237 : vector<6x1x32xf32> to vector<6x32xf32>
    %239 = vector.shape_cast %236 : vector<6x32xf32> to vector<6x1x32xf32>
    tpu.vector_store %arg18[%c0_73, %c2, %c0_74], %239 {strides = array<i32>} : memref<6x4x32xf32, #tpu.memory_space<vmem>>, vector<6x1x32xf32>,
    %240 = vector.extract_strided_slice %52 {offsets = [18, 0], sizes = [6, 128], strides = [1, 1]} : vector<24x128xf32> to vector<6x128xf32>
    %cst_75 = arith.constant dense<0.000000e+00> : vector<6x128xf32>
    %241 = tpu.matmul %206, %53, %cst_75 {dimension_numbers = #tpu.dot_dimension_numbers<[1], [0], [0], [1], [0, 0, 1, 1], [], []>} : vector<6x32xf32>, vector<32x128xf32>, vector<6x128xf32> -> vector<6x128xf32>
    %242 = arith.addf %240, %241 : vector<6x128xf32>
    %243 = vector.extract_strided_slice %242 {offsets = [0, 0], sizes = [6, 32], strides = [1, 1]} : vector<6x128xf32> to vector<6x32xf32>
    %244 = arith.negf %243 : vector<6x32xf32>
    %245 = math.exp %244 : vector<6x32xf32>
    %cst_76 = arith.constant 1.000000e+00 : f32
    %246 = vector.broadcast %cst_76 : f32 to vector<6x32xf32>
    %247 = arith.addf %246, %245 : vector<6x32xf32>
    %248 = arith.divf %246, %247 : vector<6x32xf32>
    %249 = vector.extract_strided_slice %242 {offsets = [0, 32], sizes = [6, 32], strides = [1, 1]} : vector<6x128xf32> to vector<6x32xf32>
    %250 = arith.negf %249 : vector<6x32xf32>
    %251 = math.exp %250 : vector<6x32xf32>
    %cst_77 = arith.constant 1.000000e+00 : f32
    %252 = vector.broadcast %cst_77 : f32 to vector<6x32xf32>
    %253 = arith.addf %252, %251 : vector<6x32xf32>
    %254 = arith.divf %252, %253 : vector<6x32xf32>
    %255 = vector.extract_strided_slice %242 {offsets = [0, 64], sizes = [6, 32], strides = [1, 1]} : vector<6x128xf32> to vector<6x32xf32>
    %256 = math.tanh %255 : vector<6x32xf32>
    %257 = vector.extract_strided_slice %242 {offsets = [0, 96], sizes = [6, 32], strides = [1, 1]} : vector<6x128xf32> to vector<6x32xf32>
    %258 = arith.negf %257 : vector<6x32xf32>
    %259 = math.exp %258 : vector<6x32xf32>
    %cst_78 = arith.constant 1.000000e+00 : f32
    %260 = vector.broadcast %cst_78 : f32 to vector<6x32xf32>
    %261 = arith.addf %260, %259 : vector<6x32xf32>
    %262 = arith.divf %260, %261 : vector<6x32xf32>
    %263 = arith.mulf %254, %204 : vector<6x32xf32>
    %264 = arith.mulf %248, %256 : vector<6x32xf32>
    %265 = arith.addf %263, %264 : vector<6x32xf32>
    %266 = math.tanh %265 : vector<6x32xf32>
    %267 = arith.mulf %262, %266 : vector<6x32xf32>
    %cst_79 = arith.constant dense<0.000000e+00> : vector<6x128xf32>
    %268 = tpu.matmul %267, %54, %cst_79 {dimension_numbers = #tpu.dot_dimension_numbers<[1], [0], [0], [1], [0, 0, 1, 1], [], []>} : vector<6x32xf32>, vector<32x128xf32>, vector<6x128xf32> -> vector<6x128xf32>
    %cst_80 = arith.constant dense<0.000000e+00> : vector<6x128xf32>
    %269 = tpu.matmul %236, %55, %cst_80 {dimension_numbers = #tpu.dot_dimension_numbers<[1], [0], [0], [1], [0, 0, 1, 1], [], []>} : vector<6x32xf32>, vector<32x128xf32>, vector<6x128xf32> -> vector<6x128xf32>
    %270 = arith.addf %268, %269 : vector<6x128xf32>
    %271 = vector.broadcast %56 : vector<1x128xf32> to vector<6x128xf32>
    %272 = arith.addf %270, %271 : vector<6x128xf32>
    %273 = vector.extract_strided_slice %272 {offsets = [0, 0], sizes = [6, 32], strides = [1, 1]} : vector<6x128xf32> to vector<6x32xf32>
    %274 = arith.negf %273 : vector<6x32xf32>
    %275 = math.exp %274 : vector<6x32xf32>
    %cst_81 = arith.constant 1.000000e+00 : f32
    %276 = vector.broadcast %cst_81 : f32 to vector<6x32xf32>
    %277 = arith.addf %276, %275 : vector<6x32xf32>
    %278 = arith.divf %276, %277 : vector<6x32xf32>
    %279 = vector.extract_strided_slice %272 {offsets = [0, 32], sizes = [6, 32], strides = [1, 1]} : vector<6x128xf32> to vector<6x32xf32>
    %280 = arith.negf %279 : vector<6x32xf32>
    %281 = math.exp %280 : vector<6x32xf32>
    %cst_82 = arith.constant 1.000000e+00 : f32
    %282 = vector.broadcast %cst_82 : f32 to vector<6x32xf32>
    %283 = arith.addf %282, %281 : vector<6x32xf32>
    %284 = arith.divf %282, %283 : vector<6x32xf32>
    %285 = vector.extract_strided_slice %272 {offsets = [0, 64], sizes = [6, 32], strides = [1, 1]} : vector<6x128xf32> to vector<6x32xf32>
    %286 = math.tanh %285 : vector<6x32xf32>
    %287 = vector.extract_strided_slice %272 {offsets = [0, 96], sizes = [6, 32], strides = [1, 1]} : vector<6x128xf32> to vector<6x32xf32>
    %288 = arith.negf %287 : vector<6x32xf32>
    %289 = math.exp %288 : vector<6x32xf32>
    %cst_83 = arith.constant 1.000000e+00 : f32
    %290 = vector.broadcast %cst_83 : f32 to vector<6x32xf32>
    %291 = arith.addf %290, %289 : vector<6x32xf32>
    %292 = arith.divf %290, %291 : vector<6x32xf32>
    %293 = arith.mulf %284, %234 : vector<6x32xf32>
    %294 = arith.mulf %278, %286 : vector<6x32xf32>
    %295 = arith.addf %293, %294 : vector<6x32xf32>
    %296 = math.tanh %295 : vector<6x32xf32>
    %297 = arith.mulf %292, %296 : vector<6x32xf32>
    %c0_84 = arith.constant 0 : index
    %c3 = arith.constant 3 : index
    %c0_85 = arith.constant 0 : index
    %298 = vector.load %arg18[%c0_84, %c3, %c0_85] : memref<6x4x32xf32, #tpu.memory_space<vmem>>, vector<6x1x32xf32>
    %299 = vector.shape_cast %298 : vector<6x1x32xf32> to vector<6x32xf32>
    %300 = vector.shape_cast %297 : vector<6x32xf32> to vector<6x1x32xf32>
    tpu.vector_store %arg18[%c0_84, %c3, %c0_85], %300 {strides = array<i32>} : memref<6x4x32xf32, #tpu.memory_space<vmem>>, vector<6x1x32xf32>,
    return
  }
  func.func @transform_0(%arg0: i32) -> (i32, i32) {
    %c0_i32 = arith.constant 0 : i32
    %c0_i32_0 = arith.constant 0 : i32
    %c0_i32_1 = arith.constant 0 : i32
    return %c0_i32, %c0_i32_0 : i32, i32
  }
  func.func @transform_1(%arg0: i32) -> (i32, i32) {
    %c0_i32 = arith.constant 0 : i32
    %c0_i32_0 = arith.constant 0 : i32
    %c0_i32_1 = arith.constant 0 : i32
    return %c0_i32, %c0_i32_0 : i32, i32
  }
  func.func @transform_2(%arg0: i32) -> (i32, i32) {
    %c0_i32 = arith.constant 0 : i32
    %c0_i32_0 = arith.constant 0 : i32
    %c0_i32_1 = arith.constant 0 : i32
    return %c0_i32, %c0_i32_0 : i32, i32
  }
  func.func @transform_3(%arg0: i32) -> (i32, i32) {
    %c0_i32 = arith.constant 0 : i32
    %c0_i32_0 = arith.constant 0 : i32
    %c0_i32_1 = arith.constant 0 : i32
    return %c0_i32, %c0_i32_0 : i32, i32
  }
  func.func @transform_4(%arg0: i32) -> (i32, i32) {
    %c0_i32 = arith.constant 0 : i32
    %c0_i32_0 = arith.constant 0 : i32
    %c0_i32_1 = arith.constant 0 : i32
    return %c0_i32, %c0_i32_0 : i32, i32
  }
  func.func @transform_5(%arg0: i32) -> (i32, i32) {
    %c0_i32 = arith.constant 0 : i32
    %c0_i32_0 = arith.constant 0 : i32
    %c0_i32_1 = arith.constant 0 : i32
    return %c0_i32, %c0_i32_0 : i32, i32
  }
  func.func @transform_6(%arg0: i32) -> (i32, i32) {
    %c0_i32 = arith.constant 0 : i32
    %c0_i32_0 = arith.constant 0 : i32
    %c0_i32_1 = arith.constant 0 : i32
    return %c0_i32, %c0_i32_0 : i32, i32
  }
  func.func @transform_7(%arg0: i32) -> (i32, i32) {
    %c0_i32 = arith.constant 0 : i32
    %c0_i32_0 = arith.constant 0 : i32
    %c0_i32_1 = arith.constant 0 : i32
    return %c0_i32, %c0_i32_0 : i32, i32
  }
  func.func @transform_8(%arg0: i32) -> (i32, i32) {
    %c0_i32 = arith.constant 0 : i32
    %c0_i32_0 = arith.constant 0 : i32
    %c0_i32_1 = arith.constant 0 : i32
    return %c0_i32, %c0_i32_0 : i32, i32
  }
  func.func @transform_9(%arg0: i32) -> (i32, i32) {
    %c0_i32 = arith.constant 0 : i32
    %c0_i32_0 = arith.constant 0 : i32
    %c0_i32_1 = arith.constant 0 : i32
    return %c0_i32, %c0_i32_0 : i32, i32
  }
  func.func @transform_10(%arg0: i32) -> (i32, i32) {
    %c0_i32 = arith.constant 0 : i32
    %c0_i32_0 = arith.constant 0 : i32
    %c0_i32_1 = arith.constant 0 : i32
    return %c0_i32, %c0_i32_0 : i32, i32
  }
  func.func @transform_11(%arg0: i32) -> (i32, i32) {
    %c0_i32 = arith.constant 0 : i32
    %c0_i32_0 = arith.constant 0 : i32
    %c0_i32_1 = arith.constant 0 : i32
    return %c0_i32, %c0_i32_0 : i32, i32
  }
  func.func @transform_12(%arg0: i32) -> (i32, i32) {
    %c0_i32 = arith.constant 0 : i32
    %c0_i32_0 = arith.constant 0 : i32
    %c0_i32_1 = arith.constant 0 : i32
    return %c0_i32, %c0_i32_0 : i32, i32
  }
  func.func @transform_13(%arg0: i32) -> (i32, i32) {
    %c0_i32 = arith.constant 0 : i32
    %c0_i32_0 = arith.constant 0 : i32
    %c0_i32_1 = arith.constant 0 : i32
    return %c0_i32, %c0_i32_0 : i32, i32
  }
  func.func @transform_14(%arg0: i32) -> (i32, i32) {
    %c0_i32 = arith.constant 0 : i32
    %c0_i32_0 = arith.constant 0 : i32
    %c0_i32_1 = arith.constant 0 : i32
    return %c0_i32, %c0_i32_0 : i32, i32
  }
  func.func @transform_15(%arg0: i32) -> (i32, i32) {
    %c0_i32 = arith.constant 0 : i32
    %c0_i32_0 = arith.constant 0 : i32
    %c0_i32_1 = arith.constant 0 : i32
    return %c0_i32, %c0_i32_0 : i32, i32
  }
  func.func @transform_16(%arg0: i32) -> (i32, i32) {
    %c0_i32 = arith.constant 0 : i32
    %c0_i32_0 = arith.constant 0 : i32
    %c0_i32_1 = arith.constant 0 : i32
    return %c0_i32, %c0_i32_0 : i32, i32
  }
  func.func @transform_17(%arg0: i32) -> (i32, i32, i32) {
    %c0_i32 = arith.constant 0 : i32
    %c0_i32_0 = arith.constant 0 : i32
    %c0_i32_1 = arith.constant 0 : i32
    %c0_i32_2 = arith.constant 0 : i32
    return %c0_i32, %c0_i32_0, %c0_i32_1 : i32, i32, i32
  }
}

</mosaic_0001>

<llo_original>
// kernel: tpu_custom_call.1
$region0: #{tpu_custom_call.1}
  #allocation0 [shape = 'u32[]', space=smem, size = 0x4, offset = 0x4, fixed_abs, tag = 'smem constant byte address 0x4 - core index']
  #allocation1 [shape = 'u32[72,128]{1,0:T(1,128)}', space=vmem, size = 0x9000, scoped, tag = 'internal scratch']
  %s0 = inlined_call_operand.hbm [shape: f32[6,32], index: 0, kind: input, shape index: {}]
  %s1 = inlined_call_operand.vmem [shape: f32[32,96], index: 1, kind: input, shape index: {}]
  %s2 = inlined_call_operand.vmem [shape: f32[1,96], index: 2, kind: input, shape index: {}]
  %s3 = inlined_call_operand.hbm [shape: f32[32,64], index: 3, kind: input, shape index: {}]
  %s4 = inlined_call_operand.vmem [shape: f32[1,64], index: 4, kind: input, shape index: {}]
  %s5 = inlined_call_operand.hbm [shape: f32[64,64], index: 5, kind: input, shape index: {}]
  %s6 = inlined_call_operand.vmem [shape: f32[1,64], index: 6, kind: input, shape index: {}]
  %s7 = inlined_call_operand.vmem [shape: f32[32,2], index: 7, kind: input, shape index: {}]
  %s8 = inlined_call_operand.vmem [shape: f32[1,2], index: 8, kind: input, shape index: {}]
  %s9 = inlined_call_operand.hbm [shape: f32[24,32], index: 9, kind: input, shape index: {}]
  %s10 = inlined_call_operand.hbm [shape: f32[32,128], index: 10, kind: input, shape index: {}]
  %s11 = inlined_call_operand.vmem [shape: f32[1,128], index: 11, kind: input, shape index: {}]
  %s12 = inlined_call_operand.hbm [shape: f32[32,128], index: 12, kind: input, shape index: {}]
  %s13 = inlined_call_operand.hbm [shape: f32[32,128], index: 13, kind: input, shape index: {}]
  %s14 = inlined_call_operand.hbm [shape: f32[32,128], index: 14, kind: input, shape index: {}]
  %s15 = inlined_call_operand.vmem [shape: f32[1,128], index: 15, kind: input, shape index: {}]
  %s16 = inlined_call_operand.vmem [shape: f32[6,2], index: 16, kind: output, shape index: {0}]
  %s17 = inlined_call_operand.hbm [shape: f32[6,4,32], index: 17, kind: output, shape index: {1}]
  %18 = xla_tuple %s16, %s17
  %s19 = sld [smem:[#allocation0]]
  $region114: #{tpu_custom_call.1} parent=0
    _
  %s21 = ssub.s32 1, %s19
  %s22 = scalar_select 0, %s21, %s19
  $region1: #{tpu_custom_call.1} parent=0
    #allocation2 [shape = 'u8[4096]{0}', space=vmem, size = 0x1000, scoped, tag = 'input window, operand 0, single buffered']
    #allocation3 [shape = 's32[1]{0}', space=sflag, size = 0x4, scoped, tag = 'scoped memory for tpu_custom_call.1']
    #allocation4 [shape = 's32[1]{0}', space=sflag, size = 0x4, scoped, tag = 'scoped memory for tpu_custom_call.1']
    #allocation5 [shape = 'u8[16384]{0}', space=vmem, size = 0x4000, scoped, tag = 'input window, operand 3, single buffered']
    #allocation6 [shape = 's32[1]{0}', space=sflag, size = 0x4, scoped, tag = 'scoped memory for tpu_custom_call.1']
    #allocation7 [shape = 'u8[32768]{0}', space=vmem, size = 0x8000, scoped, tag = 'input window, operand 5, single buffered']
    #allocation8 [shape = 'u8[12288]{0}', space=vmem, size = 0x3000, scoped, tag = 'input window, operand 9, single buffered']
    #allocation9 [shape = 's32[1]{0}', space=sflag, size = 0x4, scoped, tag = 'scoped memory for tpu_custom_call.1']
    #allocation10 [shape = 'u8[16384]{0}', space=vmem, size = 0x4000, scoped, tag = 'input window, operand 10, single buffered']
    #allocation11 [shape = 'u8[16384]{0}', space=vmem, size = 0x4000, scoped, tag = 'input window, operand 12, single buffered']
    #allocation12 [shape = 's32[1]{0}', space=sflag, size = 0x4, scoped, tag = 'scoped memory for tpu_custom_call.1']
    #allocation13 [shape = 'u8[16384]{0}', space=vmem, size = 0x4000, scoped, tag = 'input window, operand 13, single buffered']
    #allocation14 [shape = 'u8[16384]{0}', space=vmem, size = 0x4000, scoped, tag = 'input window, operand 14, single buffered']
    #allocation15 [shape = 's32[1]{0}', space=sflag, size = 0x4, scoped, tag = 'scoped memory for tpu_custom_call.1']
    #allocation16 [shape = 'u8[12288]{0}', space=vmem, size = 0x3000, scoped, tag = 'output window, operand 1, single buffered']
    %23 = vsyncpa [#allocation3], 0
    %24 = vsyncpa [#allocation6], 0
    %25 = vsyncpa [#allocation9], 0
    %26 = vsyncpa [#allocation12], 0
    %27 = vsyncpa [#allocation15], 0
    %28 = vsyncpa [#allocation4], 0
    // Predicated region
    $region2: #{tpu_custom_call.1} parent=1 // pred_check
      _
    $region3: #{tpu_custom_call.1} parent=1 // pred_check_branch
      %30 = sbr.rel (0) target = $region5
    $region4: #{tpu_custom_call.1} parent=1 // pred_region
      %32 = vsyncadd [#allocation3], 0
      %s34 = sshll.u32 %s0, 4
      %s35 = int_to_ptr.hbm [resolvable:$true] %s34
      %s36 = sshll.u32 [#allocation2], 4
      %s37 = int_to_ptr.vmem [resolvable:$true] %s36
      %39 = dma.hbm_to_vmem [thread:$0]  %s35, 128, %s37, [#allocation3]
    $region5: #{tpu_custom_call.1} parent=1 // pred_fallthru
      _
    // Predicated region
    $region6: #{tpu_custom_call.1} parent=1 // pred_check
      _
    $region7: #{tpu_custom_call.1} parent=1 // pred_check_branch
      %41 = sbr.rel (0) target = $region9
    $region8: #{tpu_custom_call.1} parent=1 // pred_region
      _
    $region9: #{tpu_custom_call.1} parent=1 // pred_fallthru
      _
    // Predicated region
    $region10: #{tpu_custom_call.1} parent=1 // pred_check
      _
    $region11: #{tpu_custom_call.1} parent=1 // pred_check_branch
      %43 = sbr.rel (0) target = $region13
    $region12: #{tpu_custom_call.1} parent=1 // pred_region
      _
    $region13: #{tpu_custom_call.1} parent=1 // pred_fallthru
      _
    // Predicated region
    $region14: #{tpu_custom_call.1} parent=1 // pred_check
      _
    $region15: #{tpu_custom_call.1} parent=1 // pred_check_branch
      %45 = sbr.rel (0) target = $region17
    $region16: #{tpu_custom_call.1} parent=1 // pred_region
      %47 = vsyncadd [#allocation6], 0
      %s48 = sshll.u32 %s3, 4
      %s49 = int_to_ptr.hbm [resolvable:$true] %s48
      %s50 = sshll.u32 [#allocation5], 4
      %s51 = int_to_ptr.vmem [resolvable:$true] %s50
      %56 = dma.hbm_to_vmem [thread:$0]  %s49, 512, %s51, [#allocation6], 128, 128, 8
    $region17: #{tpu_custom_call.1} parent=1 // pred_fallthru
      _
    // Predicated region
    $region18: #{tpu_custom_call.1} parent=1 // pred_check
      _
    $region19: #{tpu_custom_call.1} parent=1 // pred_check_branch
      %58 = sbr.rel (0) target = $region21
    $region20: #{tpu_custom_call.1} parent=1 // pred_region
      _
    $region21: #{tpu_custom_call.1} parent=1 // pred_fallthru
      _
    // Predicated region
    $region22: #{tpu_custom_call.1} parent=1 // pred_check
      _
    $region23: #{tpu_custom_call.1} parent=1 // pred_check_branch
      %60 = sbr.rel (0) target = $region25
    $region24: #{tpu_custom_call.1} parent=1 // pred_region
      %62 = vsyncadd [#allocation6], 0
      %s63 = sshll.u32 %s5, 4
      %s64 = int_to_ptr.hbm [resolvable:$true] %s63
      %s65 = sshll.u32 [#allocation7], 4
      %s66 = int_to_ptr.vmem [resolvable:$true] %s65
      %71 = dma.hbm_to_vmem [thread:$0]  %s64, 1024, %s66, [#allocation6], 128, 128, 8
    $region25: #{tpu_custom_call.1} parent=1 // pred_fallthru
      _
    // Predicated region
    $region26: #{tpu_custom_call.1} parent=1 // pred_check
      _
    $region27: #{tpu_custom_call.1} parent=1 // pred_check_branch
      %73 = sbr.rel (0) target = $region29
    $region28: #{tpu_custom_call.1} parent=1 // pred_region
      _
    $region29: #{tpu_custom_call.1} parent=1 // pred_fallthru
      _
    // Predicated region
    $region30: #{tpu_custom_call.1} parent=1 // pred_check
      _
    $region31: #{tpu_custom_call.1} parent=1 // pred_check_branch
      %75 = sbr.rel (0) target = $region33
    $region32: #{tpu_custom_call.1} parent=1 // pred_region
      _
    $region33: #{tpu_custom_call.1} parent=1 // pred_fallthru
      _
    // Predicated region
    $region34: #{tpu_custom_call.1} parent=1 // pred_check
      _
    $region35: #{tpu_custom_call.1} parent=1 // pred_check_branch
      %77 = sbr.rel (0) target = $region37
    $region36: #{tpu_custom_call.1} parent=1 // pred_region
      _
    $region37: #{tpu_custom_call.1} parent=1 // pred_fallthru
      _
    // Predicated region
    $region38: #{tpu_custom_call.1} parent=1 // pred_check
      _
    $region39: #{tpu_custom_call.1} parent=1 // pred_check_branch
      %79 = sbr.rel (0) target = $region41
    $region40: #{tpu_custom_call.1} parent=1 // pred_region
      %81 = vsyncadd [#allocation9], 0
      %s82 = sshll.u32 %s9, 4
      %s83 = int_to_ptr.hbm [resolvable:$true] %s82
      %s84 = sshll.u32 [#allocation8], 4
      %s85 = int_to_ptr.vmem [resolvable:$true] %s84
      %90 = dma.hbm_to_vmem [thread:$0]  %s83, 384, %s85, [#allocation9], 128, 128, 8
    $region41: #{tpu_custom_call.1} parent=1 // pred_fallthru
      _
    // Predicated region
    $region42: #{tpu_custom_call.1} parent=1 // pred_check
      _
    $region43: #{tpu_custom_call.1} parent=1 // pred_check_branch
      %92 = sbr.rel (0) target = $region45
    $region44: #{tpu_custom_call.1} parent=1 // pred_region
      %94 = vsyncadd [#allocation9], 0
      %s95 = sshll.u32 %s10, 4
      %s96 = int_to_ptr.hbm [resolvable:$true] %s95
      %s97 = sshll.u32 [#allocation10], 4
      %s98 = int_to_ptr.vmem [resolvable:$true] %s97
      %103 = dma.hbm_to_vmem [thread:$0]  %s96, 512, %s98, [#allocation9], 128, 128, 8
    $region45: #{tpu_custom_call.1} parent=1 // pred_fallthru
      _
    // Predicated region
    $region46: #{tpu_custom_call.1} parent=1 // pred_check
      _
    $region47: #{tpu_custom_call.1} parent=1 // pred_check_branch
      %105 = sbr.rel (0) target = $region49
    $region48: #{tpu_custom_call.1} parent=1 // pred_region
      _
    $region49: #{tpu_custom_call.1} parent=1 // pred_fallthru
      _
    // Predicated region
    $region50: #{tpu_custom_call.1} parent=1 // pred_check
      _
    $region51: #{tpu_custom_call.1} parent=1 // pred_check_branch
      %107 = sbr.rel (0) target = $region53
    $region52: #{tpu_custom_call.1} parent=1 // pred_region
      %109 = vsyncadd [#allocation12], 0
      %s110 = sshll.u32 %s12, 4
      %s111 = int_to_ptr.hbm [resolvable:$true] %s110
      %s112 = sshll.u32 [#allocation11], 4
      %s113 = int_to_ptr.vmem [resolvable:$true] %s112
      %118 = dma.hbm_to_vmem [thread:$0]  %s111, 512, %s113, [#allocation12], 128, 128, 8
    $region53: #{tpu_custom_call.1} parent=1 // pred_fallthru
      _
    // Predicated region
    $region54: #{tpu_custom_call.1} parent=1 // pred_check
      _
    $region55: #{tpu_custom_call.1} parent=1 // pred_check_branch
      %120 = sbr.rel (0) target = $region57
    $region56: #{tpu_custom_call.1} parent=1 // pred_region
      %122 = vsyncadd [#allocation12], 0
      %s123 = sshll.u32 %s13, 4
      %s124 = int_to_ptr.hbm [resolvable:$true] %s123
      %s125 = sshll.u32 [#allocation13], 4
      %s126 = int_to_ptr.vmem [resolvable:$true] %s125
      %131 = dma.hbm_to_vmem [thread:$0]  %s124, 512, %s126, [#allocation12], 128, 128, 8
    $region57: #{tpu_custom_call.1} parent=1 // pred_fallthru
      _
    // Predicated region
    $region58: #{tpu_custom_call.1} parent=1 // pred_check
      _
    $region59: #{tpu_custom_call.1} parent=1 // pred_check_branch
      %133 = sbr.rel (0) target = $region61
    $region60: #{tpu_custom_call.1} parent=1 // pred_region
      %135 = vsyncadd [#allocation15], 0
      %s136 = sshll.u32 %s14, 4
      %s137 = int_to_ptr.hbm [resolvable:$true] %s136
      %s138 = sshll.u32 [#allocation14], 4
      %s139 = int_to_ptr.vmem [resolvable:$true] %s138
      %144 = dma.hbm_to_vmem [thread:$0]  %s137, 512, %s139, [#allocation15], 128, 128, 8
    $region61: #{tpu_custom_call.1} parent=1 // pred_fallthru
      _
    // Predicated region
    $region62: #{tpu_custom_call.1} parent=1 // pred_check
      _
    $region63: #{tpu_custom_call.1} parent=1 // pred_check_branch
      %146 = sbr.rel (0) target = $region65
    $region64: #{tpu_custom_call.1} parent=1 // pred_region
      _
    $region65: #{tpu_custom_call.1} parent=1 // pred_fallthru
      _
    // Predicated region
    $region66: #{tpu_custom_call.1} parent=1 // pred_check
      _
    $region67: #{tpu_custom_call.1} parent=1 // pred_check_branch
      %148 = sbr.rel (0) target = $region69
    $region68: #{tpu_custom_call.1} parent=1 // pred_region
      %150 = dma.done [#allocation3], 128
    $region69: #{tpu_custom_call.1} parent=1 // pred_fallthru
      _
    // Predicated region
    $region70: #{tpu_custom_call.1} parent=1 // pred_check
      _
    $region71: #{tpu_custom_call.1} parent=1 // pred_check_branch
      %152 = sbr.rel (0) target = $region73
    $region72: #{tpu_custom_call.1} parent=1 // pred_region
      %154 = dma.done [#allocation6], 512
    $region73: #{tpu_custom_call.1} parent=1 // pred_fallthru
      _
    // Predicated region
    $region74: #{tpu_custom_call.1} parent=1 // pred_check
      _
    $region75: #{tpu_custom_call.1} parent=1 // pred_check_branch
      %156 = sbr.rel (0) target = $region77
    $region76: #{tpu_custom_call.1} parent=1 // pred_region
      %158 = dma.done [#allocation6], 1024
    $region77: #{tpu_custom_call.1} parent=1 // pred_fallthru
      _
    // Predicated region
    $region78: #{tpu_custom_call.1} parent=1 // pred_check
      _
    $region79: #{tpu_custom_call.1} parent=1 // pred_check_branch
      %160 = sbr.rel (0) target = $region81
    $region80: #{tpu_custom_call.1} parent=1 // pred_region
      %162 = dma.done [#allocation9], 384
    $region81: #{tpu_custom_call.1} parent=1 // pred_fallthru
      _
    // Predicated region
    $region82: #{tpu_custom_call.1} parent=1 // pred_check
      _
    $region83: #{tpu_custom_call.1} parent=1 // pred_check_branch
      %164 = sbr.rel (0) target = $region85
    $region84: #{tpu_custom_call.1} parent=1 // pred_region
      %166 = dma.done [#allocation9], 512
    $region85: #{tpu_custom_call.1} parent=1 // pred_fallthru
      _
    // Predicated region
    $region86: #{tpu_custom_call.1} parent=1 // pred_check
      _
    $region87: #{tpu_custom_call.1} parent=1 // pred_check_branch
      %168 = sbr.rel (0) target = $region89
    $region88: #{tpu_custom_call.1} parent=1 // pred_region
      %170 = dma.done [#allocation12], 512
    $region89: #{tpu_custom_call.1} parent=1 // pred_fallthru
      _
    // Predicated region
    $region90: #{tpu_custom_call.1} parent=1 // pred_check
      _
    $region91: #{tpu_custom_call.1} parent=1 // pred_check_branch
      %172 = sbr.rel (0) target = $region93
    $region92: #{tpu_custom_call.1} parent=1 // pred_region
      %174 = dma.done [#allocation12], 512
    $region93: #{tpu_custom_call.1} parent=1 // pred_fallthru
      _
    // Predicated region
    $region94: #{tpu_custom_call.1} parent=1 // pred_check
      _
    $region95: #{tpu_custom_call.1} parent=1 // pred_check_branch
      %176 = sbr.rel (0) target = $region97
    $region96: #{tpu_custom_call.1} parent=1 // pred_region
      %178 = dma.done [#allocation15], 512
    $region97: #{tpu_custom_call.1} parent=1 // pred_fallthru
      _
    %v179 = vld [vmem:[#allocation2] sm:$0x3f]
    %v180 = vld [vmem:[%s1] sm:$0xff]
    %v181 = vld [vmem:[%s1 + $0x8] sm:$0xff]
    %v182 = vld [vmem:[%s1 + $0x10] sm:$0xff]
    %v183 = vld [vmem:[%s1 + $0x18] sm:$0xff]
    %v184 = vld [vmem:[%s2] sm:$0x1]
    %v186 = vperm.slane %v184, 0
    %vm188 = vcmask 261120
    %v190 = vsel %vm188, %v179, 0
    %192 = vmatpush.msra.mxu0 0.0
    %193 = vmatpush.msra.mxu0 0.0
    %194 = vmatpush.msra.mxu0 0.0
    %195 = vmatpush.msra.mxu0 0.0
    %196 = vmatpush.msra.mxu0 0.0
    %197 = vmatpush.msra.mxu0 0.0
    %198 = vmatpush.msra.mxu0 0.0
    %199 = vmatpush.msra.mxu0 0.0
    %200 = vmatpush.msra.mxu0 0.0
    %201 = vmatpush.msra.mxu0 0.0
    %202 = vmatpush.msra.mxu0 0.0
    %203 = vmatpush.msra.mxu0 0.0
    %204 = vmatpush.msra.mxu0 %v183
    %205 = vmatpush.msra.mxu0 %v182
    %206 = vmatpush.msra.mxu0 %v181
    %207 = vmatpush.msra.mxu0 %v180
    %208 = vmatmul.f32.gmra.mxu0 %v190
    %v209 = vpop.f32.mrf.mxu0
    %v210 = vadd.f32 %v186, %v209
    %211 = vdwg.mxu0
    %v212 = vxor.u32 %v210, 2147483648
    %v213 = vmul.f32 %v212, 1.442695
    %v214 = vpow.pop %v213
    %v215 = vadd.f32 %v214, 1.0
    %v216 = vrcp.pop %v215
    %v217 = vmul.f32 %v215, %v216
    %v218 = vsub.f32 1.0, %v217
    %v219 = vmul.f32 %v216, %v218
    %v220 = vadd.f32 %v216, %v219
    %vm221 = vweird.f32 %v215
    %vm222 = vweird.f32 %v216
    %vm223 = vmor %vm221, %vm222
    %v224 = vsel %vm223, %v216, %v220
    %v225 = vand.u32 2147483647, %v215
    %vm226 = vcmp.eq.f32.partialorder %v225, 8.507059e+37
    %v227 = vand.u32 %v215, 2147483648
    %v228 = vor.u32 1.1754944e-38, %v227
    %v229 = vsel %vm226, %v228, %v224
    %v230 = vmul.f32 1.0, %v229
    %v231 = vtanh.pop %v210
    %233 = vrot.lane.b32.xlu0 %v231, 96
    %v234 = vpop.permute.xlu0 %233
    %v236 = vmul.f32 %v230, %v234
    %v237 = vtanh.pop %v236
    %239 = vrot.lane.b32.xlu0 %v237, 64
    %v240 = vpop.permute.xlu0 %239
    %v242 = vmul.f32 %v230, %v240
    %v243 = vld [vmem:[#allocation5] sm:$0xff]
    %v244 = vld [vmem:[#allocation5 + $0x8] sm:$0xff]
    %v245 = vld [vmem:[#allocation5 + $0x10] sm:$0xff]
    %v246 = vld [vmem:[#allocation5 + $0x18] sm:$0xff]
    %v247 = vld [vmem:[%s4] sm:$0x1]
    %v249 = vperm.slane %v247, 0
    %252 = vrot.lane.b32.xlu0 %v242, 64
    %v253 = vpop.permute.xlu0 %252
    %v254 = vsel %vm188, %v253, 0
    %256 = vmatpush.msra.mxu0 0.0
    %257 = vmatpush.msra.mxu0 0.0
    %258 = vmatpush.msra.mxu0 0.0
    %259 = vmatpush.msra.mxu0 0.0
    %260 = vmatpush.msra.mxu0 0.0
    %261 = vmatpush.msra.mxu0 0.0
    %262 = vmatpush.msra.mxu0 0.0
    %263 = vmatpush.msra.mxu0 0.0
    %264 = vmatpush.msra.mxu0 0.0
    %265 = vmatpush.msra.mxu0 0.0
    %266 = vmatpush.msra.mxu0 0.0
    %267 = vmatpush.msra.mxu0 0.0
    %268 = vmatpush.msra.mxu0 %v246
    %269 = vmatpush.msra.mxu0 %v245
    %270 = vmatpush.msra.mxu0 %v244
    %271 = vmatpush.msra.mxu0 %v243
    %272 = vmatmul.f32.gmra.mxu0 %v254
    %v273 = vpop.f32.mrf.mxu0
    %v274 = vadd.f32 %v249, %v273
    %275 = vdwg.mxu0
    %v276 = vmax.f32 %v274, 0.0
    %v277 = vld [vmem:[#allocation7] sm:$0xff]
    %v278 = vld [vmem:[#allocation7 + $0x8] sm:$0xff]
    %v279 = vld [vmem:[#allocation7 + $0x10] sm:$0xff]
    %v280 = vld [vmem:[#allocation7 + $0x18] sm:$0xff]
    %v281 = vld [vmem:[#allocation7 + $0x20] sm:$0xff]
    %v282 = vld [vmem:[#allocation7 + $0x28] sm:$0xff]
    %v283 = vld [vmem:[#allocation7 + $0x30] sm:$0xff]
    %v284 = vld [vmem:[#allocation7 + $0x38] sm:$0xff]
    %v285 = vld [vmem:[%s6] sm:$0x1]
    %v287 = vperm.slane %v285, 0
    %vm289 = vcmask 523264
    %v291 = vsel %vm289, %v276, 0
    %293 = vmatpush.msra.mxu0 0.0
    %294 = vmatpush.msra.mxu0 0.0
    %295 = vmatpush.msra.mxu0 0.0
    %296 = vmatpush.msra.mxu0 0.0
    %297 = vmatpush.msra.mxu0 0.0
    %298 = vmatpush.msra.mxu0 0.0
    %299 = vmatpush.msra.mxu0 0.0
    %300 = vmatpush.msra.mxu0 0.0
    %301 = vmatpush.msra.mxu0 %v284
    %302 = vmatpush.msra.mxu0 %v283
    %303 = vmatpush.msra.mxu0 %v282
    %304 = vmatpush.msra.mxu0 %v281
    %305 = vmatpush.msra.mxu0 %v280
    %306 = vmatpush.msra.mxu0 %v279
    %307 = vmatpush.msra.mxu0 %v278
    %308 = vmatpush.msra.mxu0 %v277
    %309 = vmatmul.f32.gmra.mxu0 %v291
    %v310 = vpop.f32.mrf.mxu0
    %v311 = vadd.f32 %v287, %v310
    %312 = vdwg.mxu0
    %v313 = vmax.f32 %v311, 0.0
    %v314 = vld [vmem:[%s7] sm:$0xff]
    %v315 = vld [vmem:[%s7 + $0x8] sm:$0xff]
    %v316 = vld [vmem:[%s7 + $0x10] sm:$0xff]
    %v317 = vld [vmem:[%s7 + $0x18] sm:$0xff]
    %v318 = vld [vmem:[%s8] sm:$0x1]
    %v320 = vperm.slane %v318, 0
    %322 = vmatpush.msra.mxu0 0.0
    %323 = vmatpush.msra.mxu0 0.0
    %324 = vmatpush.msra.mxu0 0.0
    %325 = vmatpush.msra.mxu0 0.0
    %326 = vmatpush.msra.mxu0 0.0
    %327 = vmatpush.msra.mxu0 0.0
    %328 = vmatpush.msra.mxu0 0.0
    %329 = vmatpush.msra.mxu0 0.0
    %330 = vmatpush.msra.mxu0 0.0
    %331 = vmatpush.msra.mxu0 0.0
    %332 = vmatpush.msra.mxu0 0.0
    %333 = vmatpush.msra.mxu0 0.0
    %334 = vmatpush.msra.mxu0 %v317
    %335 = vmatpush.msra.mxu0 %v316
    %336 = vmatpush.msra.mxu0 %v315
    %337 = vmatpush.msra.mxu0 %v314
    %338 = vmatmul.f32.gmra.mxu0 %v254
    %v339 = vpop.f32.mrf.mxu0
    %v340 = vadd.f32 %v320, %v339
    %341 = vdwg.mxu0
    %vm342 = vcmask 13312
    %343 = vst.msk [vmem:[%s16] sm:$0x3f] %vm342, %v340
    %v344 = vld [vmem:[#allocation8] sm:$0xff]
    %v345 = vld [vmem:[#allocation8 + $0x8] sm:$0xff]
    %v346 = vld [vmem:[#allocation8 + $0x10] sm:$0xff]
    %v347 = vld [vmem:[#allocation10] sm:$0xff]
    %v348 = vld [vmem:[#allocation10 + $0x8] sm:$0xff]
    %v349 = vld [vmem:[#allocation10 + $0x10] sm:$0xff]
    %v350 = vld [vmem:[#allocation10 + $0x18] sm:$0xff]
    %v351 = vld [vmem:[%s11] sm:$0x1]
    %v353 = vperm.slane %v351, 0
    %v356 = vsel %vm188, %v344, 0
    %v359 = vsel %vm188, %v345, 0
    %v362 = vsel %vm188, %v346, 0
    %364 = vmatpush.msra.mxu0 0.0
    %365 = vmatpush.msra.mxu0 0.0
    %366 = vmatpush.msra.mxu0 0.0
    %367 = vmatpush.msra.mxu0 0.0
    %368 = vmatpush.msra.mxu0 0.0
    %369 = vmatpush.msra.mxu0 0.0
    %370 = vmatpush.msra.mxu0 0.0
    %371 = vmatpush.msra.mxu0 0.0
    %372 = vmatpush.msra.mxu0 0.0
    %373 = vmatpush.msra.mxu0 0.0
    %374 = vmatpush.msra.mxu0 0.0
    %375 = vmatpush.msra.mxu0 0.0
    %376 = vmatpush.msra.mxu0 %v350
    %377 = vmatpush.msra.mxu0 %v349
    %378 = vmatpush.msra.mxu0 %v348
    %379 = vmatpush.msra.mxu0 %v347
    %380 = vmatmul.f32.gmra.mxu0 %v356
    %v381 = vpop.f32.mrf.mxu0
    %v382 = vadd.f32 %v353, %v381
    %383 = vmatmul.f32.gmra.mxu0 %v359
    %v384 = vpop.f32.mrf.mxu0
    %v385 = vadd.f32 %v353, %v384
    %386 = vmatmul.f32.gmra.mxu0 %v362
    %v387 = vpop.f32.mrf.mxu0
    %v388 = vadd.f32 %v353, %v387
    %389 = vdwg.mxu0
    %v390 = vld [vmem:[#allocation11] sm:$0xff]
    %v391 = vld [vmem:[#allocation11 + $0x8] sm:$0xff]
    %v392 = vld [vmem:[#allocation11 + $0x10] sm:$0xff]
    %v393 = vld [vmem:[#allocation11 + $0x18] sm:$0xff]
    %v394 = vld [vmem:[#allocation13] sm:$0xff]
    %v395 = vld [vmem:[#allocation13 + $0x8] sm:$0xff]
    %v396 = vld [vmem:[#allocation13 + $0x10] sm:$0xff]
    %v397 = vld [vmem:[#allocation13 + $0x18] sm:$0xff]
    %v398 = vld [vmem:[#allocation14] sm:$0xff]
    %v399 = vld [vmem:[#allocation14 + $0x8] sm:$0xff]
    %v400 = vld [vmem:[#allocation14 + $0x10] sm:$0xff]
    %v401 = vld [vmem:[#allocation14 + $0x18] sm:$0xff]
    %v402 = vld [vmem:[%s15] sm:$0x1]
    %v404 = vsel %vm188, %v313, 0
    %406 = vmatpush.msra.mxu0 0.0
    %407 = vmatpush.msra.mxu0 0.0
    %408 = vmatpush.msra.mxu0 0.0
    %409 = vmatpush.msra.mxu0 0.0
    %410 = vmatpush.msra.mxu0 0.0
    %411 = vmatpush.msra.mxu0 0.0
    %412 = vmatpush.msra.mxu0 0.0
    %413 = vmatpush.msra.mxu0 0.0
    %414 = vmatpush.msra.mxu0 0.0
    %415 = vmatpush.msra.mxu0 0.0
    %416 = vmatpush.msra.mxu0 0.0
    %417 = vmatpush.msra.mxu0 0.0
    %418 = vmatpush.msra.mxu0 %v393
    %419 = vmatpush.msra.mxu0 %v392
    %420 = vmatpush.msra.mxu0 %v391
    %421 = vmatpush.msra.mxu0 %v390
    %422 = vmatmul.f32.gmra.mxu0 %v404
    %v423 = vpop.f32.mrf.mxu0
    %v424 = vadd.f32 0.0, %v423
    %425 = vdwg.mxu0
    %v426 = vadd.f32 %v382, %v424
    %v427 = vxor.u32 %v426, 2147483648
    %v428 = vmul.f32 %v427, 1.442695
    %v429 = vpow.pop %v428
    %v430 = vadd.f32 %v429, 1.0
    %v431 = vrcp.pop %v430
    %v432 = vmul.f32 %v430, %v431
    %v433 = vsub.f32 1.0, %v432
    %v434 = vmul.f32 %v431, %v433
    %v435 = vadd.f32 %v431, %v434
    %vm436 = vweird.f32 %v430
    %vm437 = vweird.f32 %v431
    %vm438 = vmor %vm436, %vm437
    %v439 = vsel %vm438, %v431, %v435
    %v440 = vand.u32 2147483647, %v430
    %vm441 = vcmp.eq.f32.partialorder %v440, 8.507059e+37
    %v442 = vand.u32 %v430, 2147483648
    %v443 = vor.u32 1.1754944e-38, %v442
    %v444 = vsel %vm441, %v443, %v439
    %v445 = vmul.f32 1.0, %v444
    %v446 = vtanh.pop %v426
    %v447 = vmul.f32 %v445, %v313
    %449 = vrot.lane.b32.xlu0 %v446, 64
    %v450 = vpop.permute.xlu0 %449
    %v452 = vmul.f32 %v445, %v450
    %454 = vrot.lane.b32.xlu0 %v452, 32
    %v455 = vpop.permute.xlu0 %454
    %v457 = vadd.f32 %v447, %v455
    %v458 = vtanh.pop %v457
    %460 = vrot.lane.b32.xlu0 %v458, 64
    %v461 = vpop.permute.xlu0 %460
    %v463 = vmul.f32 %v445, %v461
    %464 = vmatpush.msra.mxu0 0.0
    %465 = vmatpush.msra.mxu0 0.0
    %466 = vmatpush.msra.mxu0 0.0
    %467 = vmatpush.msra.mxu0 0.0
    %468 = vmatpush.msra.mxu0 0.0
    %469 = vmatpush.msra.mxu0 0.0
    %470 = vmatpush.msra.mxu0 0.0
    %471 = vmatpush.msra.mxu0 0.0
    %472 = vmatpush.msra.mxu0 0.0
    %473 = vmatpush.msra.mxu0 0.0
    %474 = vmatpush.msra.mxu0 0.0
    %475 = vmatpush.msra.mxu0 0.0
    %476 = vmatpush.msra.mxu0 %v401
    %477 = vmatpush.msra.mxu0 %v400
    %478 = vmatpush.msra.mxu0 %v399
    %479 = vmatpush.msra.mxu0 %v398
    %480 = vmatmul.f32.gmra.mxu0 %v404
    %v481 = vpop.f32.mrf.mxu0
    %v482 = vadd.f32 0.0, %v481
    %483 = vdwg.mxu0
    %485 = vrot.lane.b32.xlu0 %v463, 32
    %v486 = vpop.permute.xlu0 %485
    %v487 = vsel %vm188, %v486, 0
    %489 = vmatpush.msra.mxu0 0.0
    %490 = vmatpush.msra.mxu0 0.0
    %491 = vmatpush.msra.mxu0 0.0
    %492 = vmatpush.msra.mxu0 0.0
    %493 = vmatpush.msra.mxu0 0.0
    %494 = vmatpush.msra.mxu0 0.0
    %495 = vmatpush.msra.mxu0 0.0
    %496 = vmatpush.msra.mxu0 0.0
    %497 = vmatpush.msra.mxu0 0.0
    %498 = vmatpush.msra.mxu0 0.0
    %499 = vmatpush.msra.mxu0 0.0
    %500 = vmatpush.msra.mxu0 0.0
    %501 = vmatpush.msra.mxu0 %v397
    %502 = vmatpush.msra.mxu0 %v396
    %503 = vmatpush.msra.mxu0 %v395
    %504 = vmatpush.msra.mxu0 %v394
    %505 = vmatmul.f32.gmra.mxu0 %v487
    %v506 = vpop.f32.mrf.mxu0
    %v507 = vadd.f32 %v482, %v506
    %508 = vdwg.mxu0
    %v510 = vperm.slane %v402, 0
    %v512 = vadd.f32 %v507, %v510
    %v513 = vxor.u32 %v512, 2147483648
    %v514 = vmul.f32 %v513, 1.442695
    %v515 = vpow.pop %v514
    %v516 = vadd.f32 %v515, 1.0
    %v517 = vrcp.pop %v516
    %v518 = vmul.f32 %v516, %v517
    %v519 = vsub.f32 1.0, %v518
    %v520 = vmul.f32 %v517, %v519
    %v521 = vadd.f32 %v517, %v520
    %vm522 = vweird.f32 %v516
    %vm523 = vweird.f32 %v517
    %vm524 = vmor %vm522, %vm523
    %v525 = vsel %vm524, %v517, %v521
    %v526 = vand.u32 2147483647, %v516
    %vm527 = vcmp.eq.f32.partialorder %v526, 8.507059e+37
    %v528 = vand.u32 %v516, 2147483648
    %v529 = vor.u32 1.1754944e-38, %v528
    %v530 = vsel %vm527, %v529, %v525
    %v531 = vmul.f32 1.0, %v530
    %v532 = vtanh.pop %v512
    %v533 = vmul.f32 %v531, %v313
    %535 = vrot.lane.b32.xlu0 %v532, 64
    %v536 = vpop.permute.xlu0 %535
    %v538 = vmul.f32 %v531, %v536
    %540 = vrot.lane.b32.xlu0 %v538, 32
    %v541 = vpop.permute.xlu0 %540
    %v543 = vadd.f32 %v533, %v541
    %v544 = vtanh.pop %v543
    %546 = vrot.lane.b32.xlu0 %v544, 64
    %v547 = vpop.permute.xlu0 %546
    %v549 = vmul.f32 %v531, %v547
    %v551 = vrot.slane %v549, 1
    %v552 = vrot.slane %v549, 2
    %v553 = vrot.slane %v549, 3
    %v554 = vrot.slane %v549, 4
    %v555 = vrot.slane %v549, 5
    %v556 = vperm.slane %v549, 0
    %v557 = vperm.slane %v551, 0
    %v558 = vperm.slane %v552, 0
    %v559 = vperm.slane %v553, 0
    %v560 = vperm.slane %v554, 0
    %v561 = vperm.slane %v555, 0
    %562 = vrot.lane.b32.xlu0 %v556, 32
    %v563 = vpop.permute.xlu0 %562
    %564 = vrot.lane.b32.xlu0 %v557, 32
    %v565 = vpop.permute.xlu0 %564
    %566 = vrot.lane.b32.xlu0 %v558, 32
    %v567 = vpop.permute.xlu0 %566
    %568 = vrot.lane.b32.xlu0 %v559, 32
    %v569 = vpop.permute.xlu0 %568
    %570 = vrot.lane.b32.xlu0 %v560, 32
    %v571 = vpop.permute.xlu0 %570
    %572 = vrot.lane.b32.xlu0 %v561, 32
    %v573 = vpop.permute.xlu0 %572
    %vm580 = vcmask 253952
    %581 = vst.msk [vmem:[#allocation16] sm:$0x1] %vm580, %v563
    %582 = vst.msk [vmem:[#allocation16 + $0x4] sm:$0x1] %vm580, %v565
    %583 = vst.msk [vmem:[#allocation16 + $0x8] sm:$0x1] %vm580, %v567
    %584 = vst.msk [vmem:[#allocation16 + $0xc] sm:$0x1] %vm580, %v569
    %585 = vst.msk [vmem:[#allocation16 + $0x10] sm:$0x1] %vm580, %v571
    %586 = vst.msk [vmem:[#allocation16 + $0x14] sm:$0x1] %vm580, %v573
    %587 = vmatpush.msra.mxu0 0.0
    %588 = vmatpush.msra.mxu0 0.0
    %589 = vmatpush.msra.mxu0 0.0
    %590 = vmatpush.msra.mxu0 0.0
    %591 = vmatpush.msra.mxu0 0.0
    %592 = vmatpush.msra.mxu0 0.0
    %593 = vmatpush.msra.mxu0 0.0
    %594 = vmatpush.msra.mxu0 0.0
    %595 = vmatpush.msra.mxu0 0.0
    %596 = vmatpush.msra.mxu0 0.0
    %597 = vmatpush.msra.mxu0 0.0
    %598 = vmatpush.msra.mxu0 0.0
    %599 = vmatpush.msra.mxu0 %v393
    %600 = vmatpush.msra.mxu0 %v392
    %601 = vmatpush.msra.mxu0 %v391
    %602 = vmatpush.msra.mxu0 %v390
    %603 = vmatmul.f32.gmra.mxu0 %v487
    %v604 = vpop.f32.mrf.mxu0
    %v605 = vadd.f32 0.0, %v604
    %606 = vdwg.mxu0
    %v608 = vrot.slane %v605, 2
    %v610 = vadd.f32 %v382, %v608
    %v611 = vadd.f32 %v385, %v608
    %v612 = vxor.u32 %v610, 2147483648
    %v613 = vxor.u32 %v611, 2147483648
    %v614 = vmul.f32 %v612, 1.442695
    %v615 = vpow.pop %v614
    %v616 = vmul.f32 %v613, 1.442695
    %v617 = vpow.pop %v616
    %v618 = vadd.f32 %v615, 1.0
    %v619 = vadd.f32 %v617, 1.0
    %v620 = vrcp.pop %v618
    %v621 = vmul.f32 %v618, %v620
    %v622 = vsub.f32 1.0, %v621
    %v623 = vmul.f32 %v620, %v622
    %v624 = vadd.f32 %v620, %v623
    %vm625 = vweird.f32 %v618
    %vm626 = vweird.f32 %v620
    %vm627 = vmor %vm625, %vm626
    %v628 = vsel %vm627, %v620, %v624
    %v629 = vand.u32 2147483647, %v618
    %vm630 = vcmp.eq.f32.partialorder %v629, 8.507059e+37
    %v631 = vand.u32 %v618, 2147483648
    %v632 = vor.u32 1.1754944e-38, %v631
    %v633 = vsel %vm630, %v632, %v628
    %v634 = vmul.f32 1.0, %v633
    %v635 = vrcp.pop %v619
    %v636 = vmul.f32 %v619, %v635
    %v637 = vsub.f32 1.0, %v636
    %v638 = vmul.f32 %v635, %v637
    %v639 = vadd.f32 %v635, %v638
    %vm640 = vweird.f32 %v619
    %vm641 = vweird.f32 %v635
    %vm642 = vmor %vm640, %vm641
    %v643 = vsel %vm642, %v635, %v639
    %v644 = vand.u32 2147483647, %v619
    %vm645 = vcmp.eq.f32.partialorder %v644, 8.507059e+37
    %v646 = vand.u32 %v619, 2147483648
    %v647 = vor.u32 1.1754944e-38, %v646
    %v648 = vsel %vm645, %v647, %v643
    %v649 = vmul.f32 1.0, %v648
    %v650 = vtanh.pop %v610
    %v651 = vtanh.pop %v611
    %v653 = vrot.slane %v457, 2
    %v655 = vmul.f32 %v634, %v653
    %v656 = vmul.f32 %v649, %v653
    %659 = vrot.lane.b32.xlu0 %v650, 64
    %v660 = vpop.permute.xlu0 %659
    %661 = vrot.lane.b32.xlu0 %v651, 64
    %v662 = vpop.permute.xlu0 %661
    %v665 = vmul.f32 %v634, %v660
    %v666 = vmul.f32 %v649, %v662
    %669 = vrot.lane.b32.xlu0 %v665, 32
    %v670 = vpop.permute.xlu0 %669
    %671 = vrot.lane.b32.xlu0 %v666, 32
    %v672 = vpop.permute.xlu0 %671
    %v675 = vadd.f32 %v655, %v670
    %v676 = vadd.f32 %v656, %v672
    %v677 = vtanh.pop %v675
    %v678 = vtanh.pop %v676
    %681 = vrot.lane.b32.xlu0 %v677, 64
    %v682 = vpop.permute.xlu0 %681
    %683 = vrot.lane.b32.xlu0 %v678, 64
    %v684 = vpop.permute.xlu0 %683
    %v687 = vmul.f32 %v634, %v682
    %v688 = vmul.f32 %v649, %v684
    %689 = vrot.lane.b32.xlu0 %v549, 32
    %v690 = vpop.permute.xlu0 %689
    %v691 = vsel %vm188, %v690, 0
    %693 = vmatpush.msra.mxu0 0.0
    %694 = vmatpush.msra.mxu0 0.0
    %695 = vmatpush.msra.mxu0 0.0
    %696 = vmatpush.msra.mxu0 0.0
    %697 = vmatpush.msra.mxu0 0.0
    %698 = vmatpush.msra.mxu0 0.0
    %699 = vmatpush.msra.mxu0 0.0
    %700 = vmatpush.msra.mxu0 0.0
    %701 = vmatpush.msra.mxu0 0.0
    %702 = vmatpush.msra.mxu0 0.0
    %703 = vmatpush.msra.mxu0 0.0
    %704 = vmatpush.msra.mxu0 0.0
    %705 = vmatpush.msra.mxu0 %v401
    %706 = vmatpush.msra.mxu0 %v400
    %707 = vmatpush.msra.mxu0 %v399
    %708 = vmatpush.msra.mxu0 %v398
    %709 = vmatmul.f32.gmra.mxu0 %v691
    %v710 = vpop.f32.mrf.mxu0
    %v711 = vadd.f32 0.0, %v710
    %712 = vdwg.mxu0
    %vm715 = vcmask 1041408
    %v716 = vrot.slane %v687, 6
    %v717 = vrot.slane %v688, 6
    %v718 = vsel %vm715, %v716, %v717
    %719 = vrot.lane.b32.xlu0 %v718, 32
    %v720 = vpop.permute.xlu0 %719
    %v721 = vsel %vm188, %v720, 0
    %723 = vmatpush.msra.mxu0 0.0
    %724 = vmatpush.msra.mxu0 0.0
    %725 = vmatpush.msra.mxu0 0.0
    %726 = vmatpush.msra.mxu0 0.0
    %727 = vmatpush.msra.mxu0 0.0
    %728 = vmatpush.msra.mxu0 0.0
    %729 = vmatpush.msra.mxu0 0.0
    %730 = vmatpush.msra.mxu0 0.0
    %731 = vmatpush.msra.mxu0 0.0
    %732 = vmatpush.msra.mxu0 0.0
    %733 = vmatpush.msra.mxu0 0.0
    %734 = vmatpush.msra.mxu0 0.0
    %735 = vmatpush.msra.mxu0 %v397
    %736 = vmatpush.msra.mxu0 %v396
    %737 = vmatpush.msra.mxu0 %v395
    %738 = vmatpush.msra.mxu0 %v394
    %739 = vmatmul.f32.gmra.mxu0 %v721
    %v740 = vpop.f32.mrf.mxu0
    %v741 = vadd.f32 %v711, %v740
    %742 = vdwg.mxu0
    %v743 = vadd.f32 %v741, %v510
    %v744 = vxor.u32 %v743, 2147483648
    %v745 = vmul.f32 %v744, 1.442695
    %v746 = vpow.pop %v745
    %v747 = vadd.f32 %v746, 1.0
    %v748 = vrcp.pop %v747
    %v749 = vmul.f32 %v747, %v748
    %v750 = vsub.f32 1.0, %v749
    %v751 = vmul.f32 %v748, %v750
    %v752 = vadd.f32 %v748, %v751
    %vm753 = vweird.f32 %v747
    %vm754 = vweird.f32 %v748
    %vm755 = vmor %vm753, %vm754
    %v756 = vsel %vm755, %v748, %v752
    %v757 = vand.u32 2147483647, %v747
    %vm758 = vcmp.eq.f32.partialorder %v757, 8.507059e+37
    %v759 = vand.u32 %v747, 2147483648
    %v760 = vor.u32 1.1754944e-38, %v759
    %v761 = vsel %vm758, %v760, %v756
    %v762 = vmul.f32 1.0, %v761
    %v763 = vtanh.pop %v743
    %v764 = vmul.f32 %v762, %v543
    %766 = vrot.lane.b32.xlu0 %v763, 64
    %v767 = vpop.permute.xlu0 %766
    %v769 = vmul.f32 %v762, %v767
    %771 = vrot.lane.b32.xlu0 %v769, 32
    %v772 = vpop.permute.xlu0 %771
    %v774 = vadd.f32 %v764, %v772
    %v775 = vtanh.pop %v774
    %777 = vrot.lane.b32.xlu0 %v775, 64
    %v778 = vpop.permute.xlu0 %777
    %v780 = vmul.f32 %v762, %v778
    %v782 = vrot.slane %v780, 1
    %v783 = vrot.slane %v780, 2
    %v784 = vrot.slane %v780, 3
    %v785 = vrot.slane %v780, 4
    %v786 = vrot.slane %v780, 5
    %v787 = vperm.slane %v780, 0
    %v788 = vperm.slane %v782, 0
    %v789 = vperm.slane %v783, 0
    %v790 = vperm.slane %v784, 0
    %v791 = vperm.slane %v785, 0
    %v792 = vperm.slane %v786, 0
    %793 = vrot.lane.b32.xlu0 %v787, 32
    %v794 = vpop.permute.xlu0 %793
    %795 = vrot.lane.b32.xlu0 %v788, 32
    %v796 = vpop.permute.xlu0 %795
    %797 = vrot.lane.b32.xlu0 %v789, 32
    %v798 = vpop.permute.xlu0 %797
    %799 = vrot.lane.b32.xlu0 %v790, 32
    %v800 = vpop.permute.xlu0 %799
    %801 = vrot.lane.b32.xlu0 %v791, 32
    %v802 = vpop.permute.xlu0 %801
    %803 = vrot.lane.b32.xlu0 %v792, 32
    %v804 = vpop.permute.xlu0 %803
    %811 = vst.msk [vmem:[#allocation16 + $0x1] sm:$0x1] %vm580, %v794
    %812 = vst.msk [vmem:[#allocation16 + $0x5] sm:$0x1] %vm580, %v796
    %813 = vst.msk [vmem:[#allocation16 + $0x9] sm:$0x1] %vm580, %v798
    %814 = vst.msk [vmem:[#allocation16 + $0xd] sm:$0x1] %vm580, %v800
    %815 = vst.msk [vmem:[#allocation16 + $0x11] sm:$0x1] %vm580, %v802
    %816 = vst.msk [vmem:[#allocation16 + $0x15] sm:$0x1] %vm580, %v804
    %817 = vmatpush.msra.mxu0 0.0
    %818 = vmatpush.msra.mxu0 0.0
    %819 = vmatpush.msra.mxu0 0.0
    %820 = vmatpush.msra.mxu0 0.0
    %821 = vmatpush.msra.mxu0 0.0
    %822 = vmatpush.msra.mxu0 0.0
    %823 = vmatpush.msra.mxu0 0.0
    %824 = vmatpush.msra.mxu0 0.0
    %825 = vmatpush.msra.mxu0 0.0
    %826 = vmatpush.msra.mxu0 0.0
    %827 = vmatpush.msra.mxu0 0.0
    %828 = vmatpush.msra.mxu0 0.0
    %829 = vmatpush.msra.mxu0 %v393
    %830 = vmatpush.msra.mxu0 %v392
    %831 = vmatpush.msra.mxu0 %v391
    %832 = vmatpush.msra.mxu0 %v390
    %833 = vmatmul.f32.gmra.mxu0 %v721
    %v834 = vpop.f32.mrf.mxu0
    %v835 = vadd.f32 0.0, %v834
    %836 = vdwg.mxu0
    %v838 = vrot.slane %v835, 4
    %v840 = vadd.f32 %v385, %v838
    %v841 = vadd.f32 %v388, %v838
    %v842 = vxor.u32 %v840, 2147483648
    %v843 = vxor.u32 %v841, 2147483648
    %v844 = vmul.f32 %v842, 1.442695
    %v845 = vpow.pop %v844
    %v846 = vmul.f32 %v843, 1.442695
    %v847 = vpow.pop %v846
    %v848 = vadd.f32 %v845, 1.0
    %v849 = vadd.f32 %v847, 1.0
    %v850 = vrcp.pop %v848
    %v851 = vmul.f32 %v848, %v850
    %v852 = vsub.f32 1.0, %v851
    %v853 = vmul.f32 %v850, %v852
    %v854 = vadd.f32 %v850, %v853
    %vm855 = vweird.f32 %v848
    %vm856 = vweird.f32 %v850
    %vm857 = vmor %vm855, %vm856
    %v858 = vsel %vm857, %v850, %v854
    %v859 = vand.u32 2147483647, %v848
    %vm860 = vcmp.eq.f32.partialorder %v859, 8.507059e+37
    %v861 = vand.u32 %v848, 2147483648
    %v862 = vor.u32 1.1754944e-38, %v861
    %v863 = vsel %vm860, %v862, %v858
    %v864 = vmul.f32 1.0, %v863
    %v865 = vrcp.pop %v849
    %v866 = vmul.f32 %v849, %v865
    %v867 = vsub.f32 1.0, %v866
    %v868 = vmul.f32 %v865, %v867
    %v869 = vadd.f32 %v865, %v868
    %vm870 = vweird.f32 %v849
    %vm871 = vweird.f32 %v865
    %vm872 = vmor %vm870, %vm871
    %v873 = vsel %vm872, %v865, %v869
    %v874 = vand.u32 2147483647, %v849
    %vm875 = vcmp.eq.f32.partialorder %v874, 8.507059e+37
    %v876 = vand.u32 %v849, 2147483648
    %v877 = vor.u32 1.1754944e-38, %v876
    %v878 = vsel %vm875, %v877, %v873
    %v879 = vmul.f32 1.0, %v878
    %v880 = vtanh.pop %v840
    %v881 = vtanh.pop %v841
    %vm884 = vcmask 1045504
    %v885 = vrot.slane %v675, 2
    %v886 = vrot.slane %v676, 2
    %v887 = vsel %vm884, %v885, %v886
    %v890 = vmul.f32 %v864, %v887
    %v891 = vmul.f32 %v879, %v886
    %894 = vrot.lane.b32.xlu0 %v880, 64
    %v895 = vpop.permute.xlu0 %894
    %896 = vrot.lane.b32.xlu0 %v881, 64
    %v897 = vpop.permute.xlu0 %896
    %v900 = vmul.f32 %v864, %v895
    %v901 = vmul.f32 %v879, %v897
    %904 = vrot.lane.b32.xlu0 %v900, 32
    %v905 = vpop.permute.xlu0 %904
    %906 = vrot.lane.b32.xlu0 %v901, 32
    %v907 = vpop.permute.xlu0 %906
    %v910 = vadd.f32 %v890, %v905
    %v911 = vadd.f32 %v891, %v907
    %v912 = vtanh.pop %v910
    %v913 = vtanh.pop %v911
    %916 = vrot.lane.b32.xlu0 %v912, 64
    %v917 = vpop.permute.xlu0 %916
    %918 = vrot.lane.b32.xlu0 %v913, 64
    %v919 = vpop.permute.xlu0 %918
    %v922 = vmul.f32 %v864, %v917
    %v923 = vmul.f32 %v879, %v919
    %924 = vrot.lane.b32.xlu0 %v780, 32
    %v925 = vpop.permute.xlu0 %924
    %v926 = vsel %vm188, %v925, 0
    %928 = vmatpush.msra.mxu0 0.0
    %929 = vmatpush.msra.mxu0 0.0
    %930 = vmatpush.msra.mxu0 0.0
    %931 = vmatpush.msra.mxu0 0.0
    %932 = vmatpush.msra.mxu0 0.0
    %933 = vmatpush.msra.mxu0 0.0
    %934 = vmatpush.msra.mxu0 0.0
    %935 = vmatpush.msra.mxu0 0.0
    %936 = vmatpush.msra.mxu0 0.0
    %937 = vmatpush.msra.mxu0 0.0
    %938 = vmatpush.msra.mxu0 0.0
    %939 = vmatpush.msra.mxu0 0.0
    %940 = vmatpush.msra.mxu0 %v401
    %941 = vmatpush.msra.mxu0 %v400
    %942 = vmatpush.msra.mxu0 %v399
    %943 = vmatpush.msra.mxu0 %v398
    %944 = vmatmul.f32.gmra.mxu0 %v926
    %v945 = vpop.f32.mrf.mxu0
    %v946 = vadd.f32 0.0, %v945
    %947 = vdwg.mxu0
    %vm950 = vcmask 1043456
    %v951 = vrot.slane %v922, 4
    %v952 = vrot.slane %v923, 4
    %v953 = vsel %vm950, %v951, %v952
    %954 = vrot.lane.b32.xlu0 %v953, 32
    %v955 = vpop.permute.xlu0 %954
    %v956 = vsel %vm188, %v955, 0
    %958 = vmatpush.msra.mxu0 0.0
    %959 = vmatpush.msra.mxu0 0.0
    %960 = vmatpush.msra.mxu0 0.0
    %961 = vmatpush.msra.mxu0 0.0
    %962 = vmatpush.msra.mxu0 0.0
    %963 = vmatpush.msra.mxu0 0.0
    %964 = vmatpush.msra.mxu0 0.0
    %965 = vmatpush.msra.mxu0 0.0
    %966 = vmatpush.msra.mxu0 0.0
    %967 = vmatpush.msra.mxu0 0.0
    %968 = vmatpush.msra.mxu0 0.0
    %969 = vmatpush.msra.mxu0 0.0
    %970 = vmatpush.msra.mxu0 %v397
    %971 = vmatpush.msra.mxu0 %v396
    %972 = vmatpush.msra.mxu0 %v395
    %973 = vmatpush.msra.mxu0 %v394
    %974 = vmatmul.f32.gmra.mxu0 %v956
    %v975 = vpop.f32.mrf.mxu0
    %v976 = vadd.f32 %v946, %v975
    %977 = vdwg.mxu0
    %v978 = vadd.f32 %v976, %v510
    %v979 = vxor.u32 %v978, 2147483648
    %v980 = vmul.f32 %v979, 1.442695
    %v981 = vpow.pop %v980
    %v982 = vadd.f32 %v981, 1.0
    %v983 = vrcp.pop %v982
    %v984 = vmul.f32 %v982, %v983
    %v985 = vsub.f32 1.0, %v984
    %v986 = vmul.f32 %v983, %v985
    %v987 = vadd.f32 %v983, %v986
    %vm988 = vweird.f32 %v982
    %vm989 = vweird.f32 %v983
    %vm990 = vmor %vm988, %vm989
    %v991 = vsel %vm990, %v983, %v987
    %v992 = vand.u32 2147483647, %v982
    %vm993 = vcmp.eq.f32.partialorder %v992, 8.507059e+37
    %v994 = vand.u32 %v982, 2147483648
    %v995 = vor.u32 1.1754944e-38, %v994
    %v996 = vsel %vm993, %v995, %v991
    %v997 = vmul.f32 1.0, %v996
    %v998 = vtanh.pop %v978
    %v999 = vmul.f32 %v997, %v774
    %1001 = vrot.lane.b32.xlu0 %v998, 64
    %v1002 = vpop.permute.xlu0 %1001
    %v1004 = vmul.f32 %v997, %v1002
    %1006 = vrot.lane.b32.xlu0 %v1004, 32
    %v1007 = vpop.permute.xlu0 %1006
    %v1009 = vadd.f32 %v999, %v1007
    %v1010 = vtanh.pop %v1009
    %1012 = vrot.lane.b32.xlu0 %v1010, 64
    %v1013 = vpop.permute.xlu0 %1012
    %v1015 = vmul.f32 %v997, %v1013
    %v1017 = vrot.slane %v1015, 1
    %v1018 = vrot.slane %v1015, 2
    %v1019 = vrot.slane %v1015, 3
    %v1020 = vrot.slane %v1015, 4
    %v1021 = vrot.slane %v1015, 5
    %v1022 = vperm.slane %v1015, 0
    %v1023 = vperm.slane %v1017, 0
    %v1024 = vperm.slane %v1018, 0
    %v1025 = vperm.slane %v1019, 0
    %v1026 = vperm.slane %v1020, 0
    %v1027 = vperm.slane %v1021, 0
    %1028 = vrot.lane.b32.xlu0 %v1022, 32
    %v1029 = vpop.permute.xlu0 %1028
    %1030 = vrot.lane.b32.xlu0 %v1023, 32
    %v1031 = vpop.permute.xlu0 %1030
    %1032 = vrot.lane.b32.xlu0 %v1024, 32
    %v1033 = vpop.permute.xlu0 %1032
    %1034 = vrot.lane.b32.xlu0 %v1025, 32
    %v1035 = vpop.permute.xlu0 %1034
    %1036 = vrot.lane.b32.xlu0 %v1026, 32
    %v1037 = vpop.permute.xlu0 %1036
    %1038 = vrot.lane.b32.xlu0 %v1027, 32
    %v1039 = vpop.permute.xlu0 %1038
    %1046 = vst.msk [vmem:[#allocation16 + $0x2] sm:$0x1] %vm580, %v1029
    %1047 = vst.msk [vmem:[#allocation16 + $0x6] sm:$0x1] %vm580, %v1031
    %1048 = vst.msk [vmem:[#allocation16 + $0xa] sm:$0x1] %vm580, %v1033
    %1049 = vst.msk [vmem:[#allocation16 + $0xe] sm:$0x1] %vm580, %v1035
    %1050 = vst.msk [vmem:[#allocation16 + $0x12] sm:$0x1] %vm580, %v1037
    %1051 = vst.msk [vmem:[#allocation16 + $0x16] sm:$0x1] %vm580, %v1039
    %1052 = vmatpush.msra.mxu0 0.0
    %1053 = vmatpush.msra.mxu0 0.0
    %1054 = vmatpush.msra.mxu0 0.0
    %1055 = vmatpush.msra.mxu0 0.0
    %1056 = vmatpush.msra.mxu0 0.0
    %1057 = vmatpush.msra.mxu0 0.0
    %1058 = vmatpush.msra.mxu0 0.0
    %1059 = vmatpush.msra.mxu0 0.0
    %1060 = vmatpush.msra.mxu0 0.0
    %1061 = vmatpush.msra.mxu0 0.0
    %1062 = vmatpush.msra.mxu0 0.0
    %1063 = vmatpush.msra.mxu0 0.0
    %1064 = vmatpush.msra.mxu0 %v393
    %1065 = vmatpush.msra.mxu0 %v392
    %1066 = vmatpush.msra.mxu0 %v391
    %1067 = vmatpush.msra.mxu0 %v390
    %1068 = vmatmul.f32.gmra.mxu0 %v956
    %v1069 = vpop.f32.mrf.mxu0
    %v1070 = vadd.f32 0.0, %v1069
    %1071 = vdwg.mxu0
    %v1073 = vrot.slane %v1070, 6
    %v1075 = vadd.f32 %v388, %v1073
    %v1076 = vxor.u32 %v1075, 2147483648
    %v1077 = vmul.f32 %v1076, 1.442695
    %v1078 = vpow.pop %v1077
    %v1079 = vadd.f32 %v1078, 1.0
    %v1080 = vrcp.pop %v1079
    %v1081 = vmul.f32 %v1079, %v1080
    %v1082 = vsub.f32 1.0, %v1081
    %v1083 = vmul.f32 %v1080, %v1082
    %v1084 = vadd.f32 %v1080, %v1083
    %vm1085 = vweird.f32 %v1079
    %vm1086 = vweird.f32 %v1080
    %vm1087 = vmor %vm1085, %vm1086
    %v1088 = vsel %vm1087, %v1080, %v1084
    %v1089 = vand.u32 2147483647, %v1079
    %vm1090 = vcmp.eq.f32.partialorder %v1089, 8.507059e+37
    %v1091 = vand.u32 %v1079, 2147483648
    %v1092 = vor.u32 1.1754944e-38, %v1091
    %v1093 = vsel %vm1090, %v1092, %v1088
    %v1094 = vmul.f32 1.0, %v1093
    %v1095 = vtanh.pop %v1075
    %v1098 = vrot.slane %v910, 2
    %v1099 = vrot.slane %v911, 2
    %v1100 = vsel %vm884, %v1098, %v1099
    %v1102 = vmul.f32 %v1094, %v1100
    %1104 = vrot.lane.b32.xlu0 %v1095, 64
    %v1105 = vpop.permute.xlu0 %1104
    %v1107 = vmul.f32 %v1094, %v1105
    %1109 = vrot.lane.b32.xlu0 %v1107, 32
    %v1110 = vpop.permute.xlu0 %1109
    %v1112 = vadd.f32 %v1102, %v1110
    %v1113 = vtanh.pop %v1112
    %1115 = vrot.lane.b32.xlu0 %v1113, 64
    %v1116 = vpop.permute.xlu0 %1115
    %v1118 = vmul.f32 %v1094, %v1116
    %1119 = vrot.lane.b32.xlu0 %v1015, 32
    %v1120 = vpop.permute.xlu0 %1119
    %v1121 = vsel %vm188, %v1120, 0
    %1123 = vmatpush.msra.mxu0 0.0
    %1124 = vmatpush.msra.mxu0 0.0
    %1125 = vmatpush.msra.mxu0 0.0
    %1126 = vmatpush.msra.mxu0 0.0
    %1127 = vmatpush.msra.mxu0 0.0
    %1128 = vmatpush.msra.mxu0 0.0
    %1129 = vmatpush.msra.mxu0 0.0
    %1130 = vmatpush.msra.mxu0 0.0
    %1131 = vmatpush.msra.mxu0 0.0
    %1132 = vmatpush.msra.mxu0 0.0
    %1133 = vmatpush.msra.mxu0 0.0
    %1134 = vmatpush.msra.mxu0 0.0
    %1135 = vmatpush.msra.mxu0 %v401
    %1136 = vmatpush.msra.mxu0 %v400
    %1137 = vmatpush.msra.mxu0 %v399
    %1138 = vmatpush.msra.mxu0 %v398
    %1139 = vmatmul.f32.gmra.mxu0 %v1121
    %v1140 = vpop.f32.mrf.mxu0
    %v1141 = vadd.f32 0.0, %v1140
    %1142 = vdwg.mxu0
    %v1144 = vrot.slane %v1118, 2
    %1145 = vrot.lane.b32.xlu0 %v1144, 32
    %v1146 = vpop.permute.xlu0 %1145
    %v1147 = vsel %vm188, %v1146, 0
    %1149 = vmatpush.msra.mxu0 0.0
    %1150 = vmatpush.msra.mxu0 0.0
    %1151 = vmatpush.msra.mxu0 0.0
    %1152 = vmatpush.msra.mxu0 0.0
    %1153 = vmatpush.msra.mxu0 0.0
    %1154 = vmatpush.msra.mxu0 0.0
    %1155 = vmatpush.msra.mxu0 0.0
    %1156 = vmatpush.msra.mxu0 0.0
    %1157 = vmatpush.msra.mxu0 0.0
    %1158 = vmatpush.msra.mxu0 0.0
    %1159 = vmatpush.msra.mxu0 0.0
    %1160 = vmatpush.msra.mxu0 0.0
    %1161 = vmatpush.msra.mxu0 %v397
    %1162 = vmatpush.msra.mxu0 %v396
    %1163 = vmatpush.msra.mxu0 %v395
    %1164 = vmatpush.msra.mxu0 %v394
    %1165 = vmatmul.f32.gmra.mxu0 %v1147
    %v1166 = vpop.f32.mrf.mxu0
    %v1167 = vadd.f32 %v1141, %v1166
    %1168 = vdwg.mxu0
    %v1169 = vadd.f32 %v1167, %v510
    %v1170 = vxor.u32 %v1169, 2147483648
    %v1171 = vmul.f32 %v1170, 1.442695
    %v1172 = vpow.pop %v1171
    %v1173 = vadd.f32 %v1172, 1.0
    %v1174 = vrcp.pop %v1173
    %v1175 = vmul.f32 %v1173, %v1174
    %v1176 = vsub.f32 1.0, %v1175
    %v1177 = vmul.f32 %v1174, %v1176
    %v1178 = vadd.f32 %v1174, %v1177
    %vm1179 = vweird.f32 %v1173
    %vm1180 = vweird.f32 %v1174
    %vm1181 = vmor %vm1179, %vm1180
    %v1182 = vsel %vm1181, %v1174, %v1178
    %v1183 = vand.u32 2147483647, %v1173
    %vm1184 = vcmp.eq.f32.partialorder %v1183, 8.507059e+37
    %v1185 = vand.u32 %v1173, 2147483648
    %v1186 = vor.u32 1.1754944e-38, %v1185
    %v1187 = vsel %vm1184, %v1186, %v1182
    %v1188 = vmul.f32 1.0, %v1187
    %v1189 = vtanh.pop %v1169
    %v1190 = vmul.f32 %v1188, %v1009
    %1192 = vrot.lane.b32.xlu0 %v1189, 64
    %v1193 = vpop.permute.xlu0 %1192
    %v1195 = vmul.f32 %v1188, %v1193
    %1197 = vrot.lane.b32.xlu0 %v1195, 32
    %v1198 = vpop.permute.xlu0 %1197
    %v1200 = vadd.f32 %v1190, %v1198
    %v1201 = vtanh.pop %v1200
    %1203 = vrot.lane.b32.xlu0 %v1201, 64
    %v1204 = vpop.permute.xlu0 %1203
    %v1206 = vmul.f32 %v1188, %v1204
    %v1208 = vrot.slane %v1206, 1
    %v1209 = vrot.slane %v1206, 2
    %v1210 = vrot.slane %v1206, 3
    %v1211 = vrot.slane %v1206, 4
    %v1212 = vrot.slane %v1206, 5
    %v1213 = vperm.slane %v1206, 0
    %v1214 = vperm.slane %v1208, 0
    %v1215 = vperm.slane %v1209, 0
    %v1216 = vperm.slane %v1210, 0
    %v1217 = vperm.slane %v1211, 0
    %v1218 = vperm.slane %v1212, 0
    %1219 = vrot.lane.b32.xlu0 %v1213, 32
    %v1220 = vpop.permute.xlu0 %1219
    %1221 = vrot.lane.b32.xlu0 %v1214, 32
    %v1222 = vpop.permute.xlu0 %1221
    %1223 = vrot.lane.b32.xlu0 %v1215, 32
    %v1224 = vpop.permute.xlu0 %1223
    %1225 = vrot.lane.b32.xlu0 %v1216, 32
    %v1226 = vpop.permute.xlu0 %1225
    %1227 = vrot.lane.b32.xlu0 %v1217, 32
    %v1228 = vpop.permute.xlu0 %1227
    %1229 = vrot.lane.b32.xlu0 %v1218, 32
    %v1230 = vpop.permute.xlu0 %1229
    %1237 = vst.msk [vmem:[#allocation16 + $0x3] sm:$0x1] %vm580, %v1220
    %1238 = vst.msk [vmem:[#allocation16 + $0x7] sm:$0x1] %vm580, %v1222
    %1239 = vst.msk [vmem:[#allocation16 + $0xb] sm:$0x1] %vm580, %v1224
    %1240 = vst.msk [vmem:[#allocation16 + $0xf] sm:$0x1] %vm580, %v1226
    %1241 = vst.msk [vmem:[#allocation16 + $0x13] sm:$0x1] %vm580, %v1228
    %1242 = vst.msk [vmem:[#allocation16 + $0x17] sm:$0x1] %vm580, %v1230
    // Predicated region
    $region98: #{tpu_custom_call.1} parent=1 // pred_check
      _
    $region99: #{tpu_custom_call.1} parent=1 // pred_check_branch
      %1244 = sbr.rel (0) target = $region101
    $region100: #{tpu_custom_call.1} parent=1 // pred_region
      _
    $region101: #{tpu_custom_call.1} parent=1 // pred_fallthru
      _
    // Predicated region
    $region102: #{tpu_custom_call.1} parent=1 // pred_check
      _
    $region103: #{tpu_custom_call.1} parent=1 // pred_check_branch
      %1246 = sbr.rel (0) target = $region105
    $region104: #{tpu_custom_call.1} parent=1 // pred_region
      %1248 = vsyncadd [#allocation4], 0
      %s1249 = sshll.u32 [#allocation16], 4
      %s1250 = int_to_ptr.vmem [resolvable:$true] %s1249
      %s1251 = sshll.u32 %s17, 4
      %s1252 = int_to_ptr.hbm [resolvable:$true] %s1251
      %1257 = dma.vmem_to_hbm [thread:$0]  %s1250, 384, %s1252, [#allocation4], 64, 64, 4
    $region105: #{tpu_custom_call.1} parent=1 // pred_fallthru
      _
    // Predicated region
    $region106: #{tpu_custom_call.1} parent=1 // pred_check
      _
    $region107: #{tpu_custom_call.1} parent=1 // pred_check_branch
      %1259 = sbr.rel (0) target = $region109
    $region108: #{tpu_custom_call.1} parent=1 // pred_region
      _
    $region109: #{tpu_custom_call.1} parent=1 // pred_fallthru
      _
    // Predicated region
    $region110: #{tpu_custom_call.1} parent=1 // pred_check
      _
    $region111: #{tpu_custom_call.1} parent=1 // pred_check_branch
      %1261 = sbr.rel (0) target = $region113
    $region112: #{tpu_custom_call.1} parent=1 // pred_region
      %1263 = dma.done [#allocation4], 384
    $region113: #{tpu_custom_call.1} parent=1 // pred_fallthru
      _
    %1264 = vsyncpa [#allocation3], 1
    %1265 = vsyncpa [#allocation6], 1
    %1266 = vsyncpa [#allocation9], 1
    %1267 = vsyncpa [#allocation12], 1
    %1268 = vsyncpa [#allocation15], 1
    %1269 = vsyncpa [#allocation4], 1

</llo_original>
